<compile_context>
chip_gen: v5e
topology: v5e:2x2
jax: 0.10.0
libtpu: 0.0.40
codegen_flags: <defaults>
</compile_context>

<pallas_src>
import jax
import jax.numpy as jnp
from jax.experimental import pallas as pl
from jax.experimental.pallas import tpu as pltpu


def _attn_gru_kernel(x_ref, h_ref, enc_ref,
                     wenc_ref, benc_ref, wdec_ref, bdec_ref,
                     wout_ref, bout_ref,
                     wxi_ref, wxa_ref, wh_ref, bx_ref, bh_ref,
                     out_ref):
    Bb, T, H = enc_ref.shape
    A = wenc_ref.shape[1]

    x = x_ref[...]                      # (Bb, I)
    h = h_ref[...]                      # (Bb, H)
    enc = enc_ref[...]                  # (Bb, T, H)

    # ---- attention --------------------------------------------------------
    # Fused encoder projection on the MXU: (Bb*T, H) @ (H, A).
    encp = (jnp.dot(enc.reshape(Bb * T, H), wenc_ref[...],
                    preferred_element_type=jnp.float32)
            .reshape(Bb, T, A) + benc_ref[...])                       # (Bb, T, A)

    # Decoder projection: (Bb, H) @ (H, A).
    pd = jnp.dot(h, wdec_ref[...],
                 preferred_element_type=jnp.float32) + bdec_ref[...]  # (Bb, A)

    # Lane-dense scores (Bb, T): reduce the A axis on VPU/XLU (avoids an N=1
    # MXU matmul and (T, 1) lane-sparse intermediates).  b_out cancels in the
    # softmax but is kept for fidelity with the reference module.
    s = jnp.tanh(encp + pd[:, None, :])                               # (Bb, T, A)
    scores = jnp.sum(s * wout_ref[...], axis=-1) + bout_ref[...]      # (Bb, T)

    # Softmax over T (last axis, lane-dense).
    m = jnp.max(scores, axis=-1, keepdims=True)
    e = jnp.exp(scores - m)
    probs = e * pl.reciprocal(jnp.sum(e, axis=-1, keepdims=True), approx=True)

    # Context on the MXU: (Bb, 1, T) @ (Bb, T, H) -> (Bb, H).
    attn = jnp.einsum('bqt,bth->bqh', probs[:, None, :], enc,
                      preferred_element_type=jnp.float32).reshape(Bb, H)

    # ---- GRU cell on concat([inputs, attention]) ---------------------------
    # The concat is folded into per-gate matmuls (weights pre-split upstream),
    # so there is no in-kernel lane slicing.
    def gx(g):
        return (jnp.dot(x, wxi_ref[g], preferred_element_type=jnp.float32)
                + jnp.dot(attn, wxa_ref[g], preferred_element_type=jnp.float32)
                + bx_ref[g])

    def gh(g):
        return jnp.dot(h, wh_ref[g], preferred_element_type=jnp.float32) + bh_ref[g]

    r = jax.nn.sigmoid(gx(0) + gh(0))
    z = jax.nn.sigmoid(gx(1) + gh(1))
    n = jnp.tanh(gx(2) + r * gh(2))
    out_ref[...] = ((1.0 - z) * n + z * h).astype(out_ref.dtype)


def _round_up(x, m):
    return ((x + m - 1) // m) * m


def with_attention_forward(inputs, states, encoded, params, *, block_b=None):
    """One step of WithAttention.forward (cell = GRUCell)."""
    B, I = inputs.shape
    _, H = states.shape
    _, T, _ = encoded.shape
    A = params["W_enc"].shape[0]
    f32 = jnp.float32

    # Batch block: sublane-aligned (multiple of 8 for f32), capped at 128.
    if block_b is None:
        block_b = B
    Bb = min(_round_up(max(block_b, 1), 8), 128)
    Bp = _round_up(B, Bb)
    if Bp != B:                        # pad batch; padded rows are discarded
        inputs = jnp.pad(inputs, ((0, Bp - B), (0, 0)))
        states = jnp.pad(states, ((0, Bp - B), (0, 0)))
        encoded = jnp.pad(encoded, ((0, Bp - B), (0, 0), (0, 0)))

    # Pre-transpose / pre-split weights so the kernel does row-major matmuls,
    # folds the [inputs, attention] concat, and never slices along lanes.
    wenc_T = params["W_enc"].T.astype(f32)                       # (H, A)
    benc = params["b_enc"].reshape(1, A).astype(f32)
    wdec_T = params["W_dec"].T.astype(f32)                       # (H, A)
    bdec = params["b_dec"].reshape(1, A).astype(f32)
    wout = params["w_out"].reshape(1, A).astype(f32)             # Linear(A->1) row, lane-dense
    bout = params["b_out"].reshape(1, 1).astype(f32)
    W_ih = params["W_ih"].reshape(3, H, I + H)                   # gate order (r, z, n)
    wxi = jnp.transpose(W_ih[:, :, :I], (0, 2, 1)).astype(f32)   # (3, I, H)
    wxa = jnp.transpose(W_ih[:, :, I:], (0, 2, 1)).astype(f32)   # (3, H, H)
    wh = jnp.transpose(params["W_hh"].reshape(3, H, H), (0, 2, 1)).astype(f32)  # (3, H, H)
    bx = params["b_ih"].reshape(3, 1, H).astype(f32)
    bh = params["b_hh"].reshape(3, 1, H).astype(f32)

    def full(shape):
        nd = len(shape)
        return pl.BlockSpec(shape, lambda b: (0,) * nd)

    # Rough VMEM budget (double-buffered batch blocks + weights + temporaries),
    # capped at v7x's 64 MiB physical VMEM.
    vmem_est = 4 * (4 * Bb * (I + 2 * H + T * H) + 6 * Bb * T * A
                    + 2 * (2 * H * A + 3 * H * (I + 2 * H)) + 16 * H + 4 * A)
    vmem_limit = int(min(max(2 * vmem_est, 4 * 1024 * 1024), 64 * 1024 * 1024))

    # TODO(synk): for long T / large Bb (v7x: 64 MiB VMEM), add a second
    # "arbitrary" grid axis over T with an online softmax instead of holding
    # the whole (Bb, T, H) block in VMEM.
    # TODO(synk): on v6e/v7x, cast encoded / matmul weights to bf16 (f32
    # accumulation) once the caller's tolerance allows.
    out = pl.pallas_call(
        _attn_gru_kernel,
        out_shape=jax.ShapeDtypeStruct((Bp, H), f32),
        grid=(Bp // Bb,),
        in_specs=[
            pl.BlockSpec((Bb, I), lambda b: (b, 0)),          # inputs
            pl.BlockSpec((Bb, H), lambda b: (b, 0)),          # states
            pl.BlockSpec((Bb, T, H), lambda b: (b, 0, 0)),    # encoded
            full((H, A)),                                     # W_enc^T
            full((1, A)),                                     # b_enc
            full((H, A)),                                     # W_dec^T
            full((1, A)),                                     # b_dec
            full((1, A)),                                     # w_out
            full((1, 1)),                                     # b_out
            full((3, I, H)),                                  # W_ih x-part, per gate
            full((3, H, H)),                                  # W_ih attn-part, per gate
            full((3, H, H)),                                  # W_hh, per gate
            full((3, 1, H)),                                  # b_ih, per gate
            full((3, 1, H)),                                  # b_hh, per gate
        ],
        out_specs=pl.BlockSpec((Bb, H), lambda b: (b, 0)),
        compiler_params=pltpu.CompilerParams(
            dimension_semantics=("parallel",),
            vmem_limit_bytes=vmem_limit),
    )(inputs, states, encoded,
      wenc_T, benc, wdec_T, bdec, wout, bout, wxi, wxa, wh, bx, bh)
    return out[:B]


def reference_forward(inputs, states, encoded, params):
    """Pure-JAX reference mirroring the PyTorch module exactly."""
    H = states.shape[1]
    encp = encoded @ params["W_enc"].T + params["b_enc"]
    pd = states @ params["W_dec"].T + params["b_dec"]
    s = jnp.tanh(encp + pd[:, None, :])
    scores = s @ params["w_out"].reshape(-1, 1) + params["b_out"]
    probs = jax.nn.softmax(scores, axis=1)
    attn = jnp.sum(encoded * probs, axis=1)
    stacked = jnp.concatenate([inputs, attn], axis=1)
    gx = stacked @ params["W_ih"].T + params["b_ih"]
    gh = states @ params["W_hh"].T + params["b_hh"]
    r = jax.nn.sigmoid(gx[:, :H] + gh[:, :H])
    z = jax.nn.sigmoid(gx[:, H:2 * H] + gh[:, H:2 * H])
    n = jnp.tanh(gx[:, 2 * H:] + r * gh[:, 2 * H:])
    return (1.0 - z) * n + z * states


if __name__ == "__main__":
    # batch, enc-seq, hidden, attention_dim, input_dim
    B, T, H, A, I = 16, 16, 32, 32, 16

    key = jax.random.PRNGKey(0)
    ks = jax.random.split(key, 13)
    f32 = jnp.float32

    # Deterministic synthetic parameters (PyTorch-shape convention, gate order r,z,n).
    params = {
        "W_enc": jax.random.normal(ks[0], (A, H), f32) * 0.1,
        "b_enc": jax.random.normal(ks[1], (A,), f32) * 0.1,
        "W_dec": jax.random.normal(ks[2], (A, H), f32) * 0.1,
        "b_dec": jax.random.normal(ks[3], (A,), f32) * 0.1,
        "w_out": jax.random.normal(ks[4], (A,), f32) * 0.1,
        "b_out": jax.random.normal(ks[5], (1,), f32) * 0.1,
        "W_ih": jax.random.normal(ks[6], (3 * H, I + H), f32) * 0.1,   # GRUCell weight_ih
        "W_hh": jax.random.normal(ks[7], (3 * H, H), f32) * 0.1,       # GRUCell weight_hh
        "b_ih": jax.random.normal(ks[8], (3 * H,), f32) * 0.1,
        "b_hh": jax.random.normal(ks[9], (3 * H,), f32) * 0.1,
    }

    inputs = jax.random.normal(ks[10], (B, I), f32)
    encoded = jax.random.normal(ks[11], (B, T, H), f32)
    states = jax.random.normal(ks[12], (B, H), f32) * 0.5

    # block_b=8 -> grid of 2 batch blocks (exercises the blocked grid path).
    out = with_attention_forward(inputs, states, encoded, params, block_b=8)
    out = jax.block_until_ready(out)

    ref = reference_forward(inputs, states, encoded, params)
    assert out.shape == (B, H)
    # Tolerance loosened slightly vs v1 because of the approximate (EUP)
    # reciprocal in the softmax normalization.
    assert jnp.allclose(out, ref, atol=1e-2, rtol=1e-2), "mismatch vs reference"

    print("KERNEL_OK")
</pallas_src>

<mosaic_0001>
module attributes {stable_mosaic.version = 11 : i64} {
  func.func @_attn_gru_kernel(%arg0: i32, %arg1: memref<8x16xf32, #tpu.memory_space<vmem>>, %arg2: memref<8x32xf32, #tpu.memory_space<vmem>>, %arg3: memref<8x16x32xf32, #tpu.memory_space<vmem>>, %arg4: memref<32x32xf32, #tpu.memory_space<vmem>>, %arg5: memref<1x32xf32, #tpu.memory_space<vmem>>, %arg6: memref<32x32xf32, #tpu.memory_space<vmem>>, %arg7: memref<1x32xf32, #tpu.memory_space<vmem>>, %arg8: memref<1x32xf32, #tpu.memory_space<vmem>>, %arg9: memref<1x1xf32, #tpu.memory_space<vmem>>, %arg10: memref<3x16x32xf32, #tpu.memory_space<vmem>>, %arg11: memref<3x32x32xf32, #tpu.memory_space<vmem>>, %arg12: memref<3x32x32xf32, #tpu.memory_space<vmem>>, %arg13: memref<3x1x32xf32, #tpu.memory_space<vmem>>, %arg14: memref<3x1x32xf32, #tpu.memory_space<vmem>>, %arg15: memref<8x32xf32, #tpu.memory_space<vmem>>) attributes {dimension_semantics = [#tpu.dimension_semantics<parallel>], iteration_bounds = array<i64: 2>, scalar_prefetch = 0 : i64, scratch_operands = 0 : i64, tpu.core_type = #tpu.core_type<tc>, window_params = [{transform_indices = @transform_0, window_bounds = array<i64: 8, 16>}, {transform_indices = @transform_1, window_bounds = array<i64: 8, 32>}, {transform_indices = @transform_2, window_bounds = array<i64: 8, 16, 32>}, {pipeline_mode = #tpu.pipeline_mode<synchronous>, transform_indices = @transform_3, window_bounds = array<i64: 32, 32>}, {pipeline_mode = #tpu.pipeline_mode<synchronous>, transform_indices = @transform_4, window_bounds = array<i64: 1, 32>}, {pipeline_mode = #tpu.pipeline_mode<synchronous>, transform_indices = @transform_5, window_bounds = array<i64: 32, 32>}, {pipeline_mode = #tpu.pipeline_mode<synchronous>, transform_indices = @transform_6, window_bounds = array<i64: 1, 32>}, {pipeline_mode = #tpu.pipeline_mode<synchronous>, transform_indices = @transform_7, window_bounds = array<i64: 1, 32>}, {pipeline_mode = #tpu.pipeline_mode<synchronous>, transform_indices = @transform_8, window_bounds = array<i64: 1, 1>}, {pipeline_mode = #tpu.pipeline_mode<synchronous>, transform_indices = @transform_9, window_bounds = array<i64: 3, 16, 32>}, {pipeline_mode = #tpu.pipeline_mode<synchronous>, transform_indices = @transform_10, window_bounds = array<i64: 3, 32, 32>}, {pipeline_mode = #tpu.pipeline_mode<synchronous>, transform_indices = @transform_11, window_bounds = array<i64: 3, 32, 32>}, {pipeline_mode = #tpu.pipeline_mode<synchronous>, transform_indices = @transform_12, window_bounds = array<i64: 3, 1, 32>}, {pipeline_mode = #tpu.pipeline_mode<synchronous>, transform_indices = @transform_13, window_bounds = array<i64: 3, 1, 32>}, {transform_indices = @transform_14, window_bounds = array<i64: 8, 32>}]} {
    %c0 = arith.constant 0 : index
    %c0_0 = arith.constant 0 : index
    %0 = vector.load %arg1[%c0, %c0_0] : memref<8x16xf32, #tpu.memory_space<vmem>>, vector<8x16xf32>
    %c0_1 = arith.constant 0 : index
    %c0_2 = arith.constant 0 : index
    %1 = vector.load %arg2[%c0_1, %c0_2] : memref<8x32xf32, #tpu.memory_space<vmem>>, vector<8x32xf32>
    %c0_3 = arith.constant 0 : index
    %c0_4 = arith.constant 0 : index
    %c0_5 = arith.constant 0 : index
    %2 = vector.load %arg3[%c0_3, %c0_4, %c0_5] : memref<8x16x32xf32, #tpu.memory_space<vmem>>, vector<8x16x32xf32>
    %3 = vector.shape_cast %2 : vector<8x16x32xf32> to vector<128x32xf32>
    %c0_6 = arith.constant 0 : index
    %c0_7 = arith.constant 0 : index
    %4 = vector.load %arg4[%c0_6, %c0_7] : memref<32x32xf32, #tpu.memory_space<vmem>>, vector<32x32xf32>
    %cst = arith.constant dense<0.000000e+00> : vector<128x32xf32>
    %5 = tpu.matmul %3, %4, %cst {dimension_numbers = #tpu.dot_dimension_numbers<[1], [0], [0], [1], [0, 0, 1, 1], [], []>} : vector<128x32xf32>, vector<32x32xf32>, vector<128x32xf32> -> vector<128x32xf32>
    %6 = vector.shape_cast %5 : vector<128x32xf32> to vector<8x16x32xf32>
    %c0_8 = arith.constant 0 : index
    %c0_9 = arith.constant 0 : index
    %7 = vector.load %arg5[%c0_8, %c0_9] : memref<1x32xf32, #tpu.memory_space<vmem>>, vector<1x32xf32>
    %8 = vector.shape_cast %7 : vector<1x32xf32> to vector<1x1x32xf32>
    %9 = vector.broadcast %8 : vector<1x1x32xf32> to vector<8x16x32xf32>
    %10 = arith.addf %6, %9 : vector<8x16x32xf32>
    %c0_10 = arith.constant 0 : index
    %c0_11 = arith.constant 0 : index
    %11 = vector.load %arg6[%c0_10, %c0_11] : memref<32x32xf32, #tpu.memory_space<vmem>>, vector<32x32xf32>
    %cst_12 = arith.constant dense<0.000000e+00> : vector<8x32xf32>
    %12 = tpu.matmul %1, %11, %cst_12 {dimension_numbers = #tpu.dot_dimension_numbers<[1], [0], [0], [1], [0, 0, 1, 1], [], []>} : vector<8x32xf32>, vector<32x32xf32>, vector<8x32xf32> -> vector<8x32xf32>
    %c0_13 = arith.constant 0 : index
    %c0_14 = arith.constant 0 : index
    %13 = vector.load %arg7[%c0_13, %c0_14] : memref<1x32xf32, #tpu.memory_space<vmem>>, vector<1x32xf32>
    %14 = vector.broadcast %13 : vector<1x32xf32> to vector<8x32xf32>
    %15 = arith.addf %12, %14 : vector<8x32xf32>
    %16 = vector.shape_cast %15 : vector<8x32xf32> to vector<8x1x32xf32>
    %17 = vector.broadcast %16 : vector<8x1x32xf32> to vector<8x16x32xf32>
    %18 = arith.addf %10, %17 : vector<8x16x32xf32>
    %19 = math.tanh %18 : vector<8x16x32xf32>
    %c0_15 = arith.constant 0 : index
    %c0_16 = arith.constant 0 : index
    %20 = vector.load %arg8[%c0_15, %c0_16] : memref<1x32xf32, #tpu.memory_space<vmem>>, vector<1x32xf32>
    %21 = vector.shape_cast %20 : vector<1x32xf32> to vector<1x1x32xf32>
    %22 = vector.broadcast %21 : vector<1x1x32xf32> to vector<8x16x32xf32>
    %23 = arith.mulf %19, %22 : vector<8x16x32xf32>
    %cst_17 = arith.constant dense<0.000000e+00> : vector<8x16xf32>
    %24 = vector.multi_reduction <add>, %23, %cst_17 [2] : vector<8x16x32xf32> to vector<8x16xf32>
    %c0_18 = arith.constant 0 : index
    %c0_19 = arith.constant 0 : index
    %25 = vector.load %arg9[%c0_18, %c0_19] : memref<1x1xf32, #tpu.memory_space<vmem>>, vector<1x1xf32>
    %26 = vector.broadcast %25 : vector<1x1xf32> to vector<8x16xf32>
    %27 = arith.addf %24, %26 : vector<8x16xf32>
    %cst_20 = arith.constant dense<0xFF800000> : vector<8xf32>
    %28 = vector.multi_reduction <maximumf>, %27, %cst_20 [1] : vector<8x16xf32> to vector<8xf32>
    %29 = vector.shape_cast %28 : vector<8xf32> to vector<8x1xf32>
    %30 = vector.broadcast %29 : vector<8x1xf32> to vector<8x16xf32>
    %31 = arith.subf %27, %30 : vector<8x16xf32>
    %32 = math.exp %31 : vector<8x16xf32>
    %cst_21 = arith.constant dense<0.000000e+00> : vector<8xf32>
    %33 = vector.multi_reduction <add>, %32, %cst_21 [1] : vector<8x16xf32> to vector<8xf32>
    %34 = vector.shape_cast %33 : vector<8xf32> to vector<8x1xf32>
    %35 = tpu.reciprocal %34 {approx = true} : vector<8x1xf32> -> vector<8x1xf32>
    %36 = vector.broadcast %35 : vector<8x1xf32> to vector<8x16xf32>
    %37 = arith.mulf %32, %36 : vector<8x16xf32>
    %38 = vector.shape_cast %37 : vector<8x16xf32> to vector<8x1x16xf32>
    "tpu.trace_start"() <{level = 10 : i32, message = "bqt,bth->bqh"}> : () -> ()
    %cst_22 = arith.constant dense<0.000000e+00> : vector<8x1x32xf32>
    %39 = tpu.matmul %38, %2, %cst_22 {dimension_numbers = #tpu.dot_dimension_numbers<[2], [1], [1], [2], [0, 0, 0, 1, 1, 2], [0], [0]>} : vector<8x1x16xf32>, vector<8x16x32xf32>, vector<8x1x32xf32> -> vector<8x1x32xf32>
    "tpu.trace_stop"() : () -> ()
    %40 = vector.shape_cast %39 : vector<8x1x32xf32> to vector<8x32xf32>
    %c0_23 = arith.constant 0 : index
    %c0_24 = arith.constant 0 : index
    %c0_25 = arith.constant 0 : index
    %41 = vector.load %arg10[%c0_23, %c0_24, %c0_25] : memref<3x16x32xf32, #tpu.memory_space<vmem>>, vector<1x16x32xf32>
    %42 = vector.shape_cast %41 : vector<1x16x32xf32> to vector<16x32xf32>
    %cst_26 = arith.constant dense<0.000000e+00> : vector<8x32xf32>
    %43 = tpu.matmul %0, %42, %cst_26 {dimension_numbers = #tpu.dot_dimension_numbers<[1], [0], [0], [1], [0, 0, 1, 1], [], []>} : vector<8x16xf32>, vector<16x32xf32>, vector<8x32xf32> -> vector<8x32xf32>
    %c0_27 = arith.constant 0 : index
    %c0_28 = arith.constant 0 : index
    %c0_29 = arith.constant 0 : index
    %44 = vector.load %arg11[%c0_27, %c0_28, %c0_29] : memref<3x32x32xf32, #tpu.memory_space<vmem>>, vector<1x32x32xf32>
    %45 = vector.shape_cast %44 : vector<1x32x32xf32> to vector<32x32xf32>
    %cst_30 = arith.constant dense<0.000000e+00> : vector<8x32xf32>
    %46 = tpu.matmul %40, %45, %cst_30 {dimension_numbers = #tpu.dot_dimension_numbers<[1], [0], [0], [1], [0, 0, 1, 1], [], []>} : vector<8x32xf32>, vector<32x32xf32>, vector<8x32xf32> -> vector<8x32xf32>
    %47 = arith.addf %43, %46 : vector<8x32xf32>
    %c0_31 = arith.constant 0 : index
    %c0_32 = arith.constant 0 : index
    %c0_33 = arith.constant 0 : index
    %48 = vector.load %arg13[%c0_31, %c0_32, %c0_33] : memref<3x1x32xf32, #tpu.memory_space<vmem>>, vector<1x1x32xf32>
    %49 = vector.shape_cast %48 : vector<1x1x32xf32> to vector<1x32xf32>
    %50 = vector.broadcast %49 : vector<1x32xf32> to vector<8x32xf32>
    %51 = arith.addf %47, %50 : vector<8x32xf32>
    %c0_34 = arith.constant 0 : index
    %c0_35 = arith.constant 0 : index
    %c0_36 = arith.constant 0 : index
    %52 = vector.load %arg12[%c0_34, %c0_35, %c0_36] : memref<3x32x32xf32, #tpu.memory_space<vmem>>, vector<1x32x32xf32>
    %53 = vector.shape_cast %52 : vector<1x32x32xf32> to vector<32x32xf32>
    %cst_37 = arith.constant dense<0.000000e+00> : vector<8x32xf32>
    %54 = tpu.matmul %1, %53, %cst_37 {dimension_numbers = #tpu.dot_dimension_numbers<[1], [0], [0], [1], [0, 0, 1, 1], [], []>} : vector<8x32xf32>, vector<32x32xf32>, vector<8x32xf32> -> vector<8x32xf32>
    %c0_38 = arith.constant 0 : index
    %c0_39 = arith.constant 0 : index
    %c0_40 = arith.constant 0 : index
    %55 = vector.load %arg14[%c0_38, %c0_39, %c0_40] : memref<3x1x32xf32, #tpu.memory_space<vmem>>, vector<1x1x32xf32>
    %56 = vector.shape_cast %55 : vector<1x1x32xf32> to vector<1x32xf32>
    %57 = vector.broadcast %56 : vector<1x32xf32> to vector<8x32xf32>
    %58 = arith.addf %54, %57 : vector<8x32xf32>
    %59 = arith.addf %51, %58 : vector<8x32xf32>
    %60 = arith.negf %59 : vector<8x32xf32>
    %61 = math.exp %60 : vector<8x32xf32>
    %cst_41 = arith.constant 1.000000e+00 : f32
    %62 = vector.broadcast %cst_41 : f32 to vector<8x32xf32>
    %63 = arith.addf %62, %61 : vector<8x32xf32>
    %64 = arith.divf %62, %63 : vector<8x32xf32>
    %c1 = arith.constant 1 : index
    %c0_42 = arith.constant 0 : index
    %c0_43 = arith.constant 0 : index
    %65 = vector.load %arg10[%c1, %c0_42, %c0_43] : memref<3x16x32xf32, #tpu.memory_space<vmem>>, vector<1x16x32xf32>
    %66 = vector.shape_cast %65 : vector<1x16x32xf32> to vector<16x32xf32>
    %cst_44 = arith.constant dense<0.000000e+00> : vector<8x32xf32>
    %67 = tpu.matmul %0, %66, %cst_44 {dimension_numbers = #tpu.dot_dimension_numbers<[1], [0], [0], [1], [0, 0, 1, 1], [], []>} : vector<8x16xf32>, vector<16x32xf32>, vector<8x32xf32> -> vector<8x32xf32>
    %c1_45 = arith.constant 1 : index
    %c0_46 = arith.constant 0 : index
    %c0_47 = arith.constant 0 : index
    %68 = vector.load %arg11[%c1_45, %c0_46, %c0_47] : memref<3x32x32xf32, #tpu.memory_space<vmem>>, vector<1x32x32xf32>
    %69 = vector.shape_cast %68 : vector<1x32x32xf32> to vector<32x32xf32>
    %cst_48 = arith.constant dense<0.000000e+00> : vector<8x32xf32>
    %70 = tpu.matmul %40, %69, %cst_48 {dimension_numbers = #tpu.dot_dimension_numbers<[1], [0], [0], [1], [0, 0, 1, 1], [], []>} : vector<8x32xf32>, vector<32x32xf32>, vector<8x32xf32> -> vector<8x32xf32>
    %71 = arith.addf %67, %70 : vector<8x32xf32>
    %c1_49 = arith.constant 1 : index
    %c0_50 = arith.constant 0 : index
    %c0_51 = arith.constant 0 : index
    %72 = vector.load %arg13[%c1_49, %c0_50, %c0_51] : memref<3x1x32xf32, #tpu.memory_space<vmem>>, vector<1x1x32xf32>
    %73 = vector.shape_cast %72 : vector<1x1x32xf32> to vector<1x32xf32>
    %74 = vector.broadcast %73 : vector<1x32xf32> to vector<8x32xf32>
    %75 = arith.addf %71, %74 : vector<8x32xf32>
    %c1_52 = arith.constant 1 : index
    %c0_53 = arith.constant 0 : index
    %c0_54 = arith.constant 0 : index
    %76 = vector.load %arg12[%c1_52, %c0_53, %c0_54] : memref<3x32x32xf32, #tpu.memory_space<vmem>>, vector<1x32x32xf32>
    %77 = vector.shape_cast %76 : vector<1x32x32xf32> to vector<32x32xf32>
    %cst_55 = arith.constant dense<0.000000e+00> : vector<8x32xf32>
    %78 = tpu.matmul %1, %77, %cst_55 {dimension_numbers = #tpu.dot_dimension_numbers<[1], [0], [0], [1], [0, 0, 1, 1], [], []>} : vector<8x32xf32>, vector<32x32xf32>, vector<8x32xf32> -> vector<8x32xf32>
    %c1_56 = arith.constant 1 : index
    %c0_57 = arith.constant 0 : index
    %c0_58 = arith.constant 0 : index
    %79 = vector.load %arg14[%c1_56, %c0_57, %c0_58] : memref<3x1x32xf32, #tpu.memory_space<vmem>>, vector<1x1x32xf32>
    %80 = vector.shape_cast %79 : vector<1x1x32xf32> to vector<1x32xf32>
    %81 = vector.broadcast %80 : vector<1x32xf32> to vector<8x32xf32>
    %82 = arith.addf %78, %81 : vector<8x32xf32>
    %83 = arith.addf %75, %82 : vector<8x32xf32>
    %84 = arith.negf %83 : vector<8x32xf32>
    %85 = math.exp %84 : vector<8x32xf32>
    %cst_59 = arith.constant 1.000000e+00 : f32
    %86 = vector.broadcast %cst_59 : f32 to vector<8x32xf32>
    %87 = arith.addf %86, %85 : vector<8x32xf32>
    %88 = arith.divf %86, %87 : vector<8x32xf32>
    %c2 = arith.constant 2 : index
    %c0_60 = arith.constant 0 : index
    %c0_61 = arith.constant 0 : index
    %89 = vector.load %arg10[%c2, %c0_60, %c0_61] : memref<3x16x32xf32, #tpu.memory_space<vmem>>, vector<1x16x32xf32>
    %90 = vector.shape_cast %89 : vector<1x16x32xf32> to vector<16x32xf32>
    %cst_62 = arith.constant dense<0.000000e+00> : vector<8x32xf32>
    %91 = tpu.matmul %0, %90, %cst_62 {dimension_numbers = #tpu.dot_dimension_numbers<[1], [0], [0], [1], [0, 0, 1, 1], [], []>} : vector<8x16xf32>, vector<16x32xf32>, vector<8x32xf32> -> vector<8x32xf32>
    %c2_63 = arith.constant 2 : index
    %c0_64 = arith.constant 0 : index
    %c0_65 = arith.constant 0 : index
    %92 = vector.load %arg11[%c2_63, %c0_64, %c0_65] : memref<3x32x32xf32, #tpu.memory_space<vmem>>, vector<1x32x32xf32>
    %93 = vector.shape_cast %92 : vector<1x32x32xf32> to vector<32x32xf32>
    %cst_66 = arith.constant dense<0.000000e+00> : vector<8x32xf32>
    %94 = tpu.matmul %40, %93, %cst_66 {dimension_numbers = #tpu.dot_dimension_numbers<[1], [0], [0], [1], [0, 0, 1, 1], [], []>} : vector<8x32xf32>, vector<32x32xf32>, vector<8x32xf32> -> vector<8x32xf32>
    %95 = arith.addf %91, %94 : vector<8x32xf32>
    %c2_67 = arith.constant 2 : index
    %c0_68 = arith.constant 0 : index
    %c0_69 = arith.constant 0 : index
    %96 = vector.load %arg13[%c2_67, %c0_68, %c0_69] : memref<3x1x32xf32, #tpu.memory_space<vmem>>, vector<1x1x32xf32>
    %97 = vector.shape_cast %96 : vector<1x1x32xf32> to vector<1x32xf32>
    %98 = vector.broadcast %97 : vector<1x32xf32> to vector<8x32xf32>
    %99 = arith.addf %95, %98 : vector<8x32xf32>
    %c2_70 = arith.constant 2 : index
    %c0_71 = arith.constant 0 : index
    %c0_72 = arith.constant 0 : index
    %100 = vector.load %arg12[%c2_70, %c0_71, %c0_72] : memref<3x32x32xf32, #tpu.memory_space<vmem>>, vector<1x32x32xf32>
    %101 = vector.shape_cast %100 : vector<1x32x32xf32> to vector<32x32xf32>
    %cst_73 = arith.constant dense<0.000000e+00> : vector<8x32xf32>
    %102 = tpu.matmul %1, %101, %cst_73 {dimension_numbers = #tpu.dot_dimension_numbers<[1], [0], [0], [1], [0, 0, 1, 1], [], []>} : vector<8x32xf32>, vector<32x32xf32>, vector<8x32xf32> -> vector<8x32xf32>
    %c2_74 = arith.constant 2 : index
    %c0_75 = arith.constant 0 : index
    %c0_76 = arith.constant 0 : index
    %103 = vector.load %arg14[%c2_74, %c0_75, %c0_76] : memref<3x1x32xf32, #tpu.memory_space<vmem>>, vector<1x1x32xf32>
    %104 = vector.shape_cast %103 : vector<1x1x32xf32> to vector<1x32xf32>
    %105 = vector.broadcast %104 : vector<1x32xf32> to vector<8x32xf32>
    %106 = arith.addf %102, %105 : vector<8x32xf32>
    %107 = arith.mulf %64, %106 : vector<8x32xf32>
    %108 = arith.addf %99, %107 : vector<8x32xf32>
    %109 = math.tanh %108 : vector<8x32xf32>
    %cst_77 = arith.constant 1.000000e+00 : f32
    %110 = vector.broadcast %cst_77 : f32 to vector<8x32xf32>
    %111 = arith.subf %110, %88 : vector<8x32xf32>
    %112 = arith.mulf %111, %109 : vector<8x32xf32>
    %113 = arith.mulf %88, %1 : vector<8x32xf32>
    %114 = arith.addf %112, %113 : vector<8x32xf32>
    %c0_78 = arith.constant 0 : index
    %c0_79 = arith.constant 0 : index
    %115 = vector.load %arg15[%c0_78, %c0_79] : memref<8x32xf32, #tpu.memory_space<vmem>>, vector<8x32xf32>
    tpu.vector_store %arg15[%c0_78, %c0_79], %114 {strides = array<i32>} : memref<8x32xf32, #tpu.memory_space<vmem>>, vector<8x32xf32>,
    return
  }
  func.func @transform_0(%arg0: i32) -> (i32, i32) {
    %c0_i32 = arith.constant 0 : i32
    %c0_i32_0 = arith.constant 0 : i32
    return %arg0, %c0_i32 : i32, i32
  }
  func.func @transform_1(%arg0: i32) -> (i32, i32) {
    %c0_i32 = arith.constant 0 : i32
    %c0_i32_0 = arith.constant 0 : i32
    return %arg0, %c0_i32 : i32, i32
  }
  func.func @transform_2(%arg0: i32) -> (i32, i32, i32) {
    %c0_i32 = arith.constant 0 : i32
    %c0_i32_0 = arith.constant 0 : i32
    %c0_i32_1 = arith.constant 0 : i32
    return %arg0, %c0_i32, %c0_i32_0 : i32, i32, i32
  }
  func.func @transform_3(%arg0: i32) -> (i32, i32) {
    %c0_i32 = arith.constant 0 : i32
    %c0_i32_0 = arith.constant 0 : i32
    %c0_i32_1 = arith.constant 0 : i32
    return %c0_i32, %c0_i32_0 : i32, i32
  }
  func.func @transform_4(%arg0: i32) -> (i32, i32) {
    %c0_i32 = arith.constant 0 : i32
    %c0_i32_0 = arith.constant 0 : i32
    %c0_i32_1 = arith.constant 0 : i32
    return %c0_i32, %c0_i32_0 : i32, i32
  }
  func.func @transform_5(%arg0: i32) -> (i32, i32) {
    %c0_i32 = arith.constant 0 : i32
    %c0_i32_0 = arith.constant 0 : i32
    %c0_i32_1 = arith.constant 0 : i32
    return %c0_i32, %c0_i32_0 : i32, i32
  }
  func.func @transform_6(%arg0: i32) -> (i32, i32) {
    %c0_i32 = arith.constant 0 : i32
    %c0_i32_0 = arith.constant 0 : i32
    %c0_i32_1 = arith.constant 0 : i32
    return %c0_i32, %c0_i32_0 : i32, i32
  }
  func.func @transform_7(%arg0: i32) -> (i32, i32) {
    %c0_i32 = arith.constant 0 : i32
    %c0_i32_0 = arith.constant 0 : i32
    %c0_i32_1 = arith.constant 0 : i32
    return %c0_i32, %c0_i32_0 : i32, i32
  }
  func.func @transform_8(%arg0: i32) -> (i32, i32) {
    %c0_i32 = arith.constant 0 : i32
    %c0_i32_0 = arith.constant 0 : i32
    %c0_i32_1 = arith.constant 0 : i32
    return %c0_i32, %c0_i32_0 : i32, i32
  }
  func.func @transform_9(%arg0: i32) -> (i32, i32, i32) {
    %c0_i32 = arith.constant 0 : i32
    %c0_i32_0 = arith.constant 0 : i32
    %c0_i32_1 = arith.constant 0 : i32
    %c0_i32_2 = arith.constant 0 : i32
    return %c0_i32, %c0_i32_0, %c0_i32_1 : i32, i32, i32
  }
  func.func @transform_10(%arg0: i32) -> (i32, i32, i32) {
    %c0_i32 = arith.constant 0 : i32
    %c0_i32_0 = arith.constant 0 : i32
    %c0_i32_1 = arith.constant 0 : i32
    %c0_i32_2 = arith.constant 0 : i32
    return %c0_i32, %c0_i32_0, %c0_i32_1 : i32, i32, i32
  }
  func.func @transform_11(%arg0: i32) -> (i32, i32, i32) {
    %c0_i32 = arith.constant 0 : i32
    %c0_i32_0 = arith.constant 0 : i32
    %c0_i32_1 = arith.constant 0 : i32
    %c0_i32_2 = arith.constant 0 : i32
    return %c0_i32, %c0_i32_0, %c0_i32_1 : i32, i32, i32
  }
  func.func @transform_12(%arg0: i32) -> (i32, i32, i32) {
    %c0_i32 = arith.constant 0 : i32
    %c0_i32_0 = arith.constant 0 : i32
    %c0_i32_1 = arith.constant 0 : i32
    %c0_i32_2 = arith.constant 0 : i32
    return %c0_i32, %c0_i32_0, %c0_i32_1 : i32, i32, i32
  }
  func.func @transform_13(%arg0: i32) -> (i32, i32, i32) {
    %c0_i32 = arith.constant 0 : i32
    %c0_i32_0 = arith.constant 0 : i32
    %c0_i32_1 = arith.constant 0 : i32
    %c0_i32_2 = arith.constant 0 : i32
    return %c0_i32, %c0_i32_0, %c0_i32_1 : i32, i32, i32
  }
  func.func @transform_14(%arg0: i32) -> (i32, i32) {
    %c0_i32 = arith.constant 0 : i32
    %c0_i32_0 = arith.constant 0 : i32
    return %arg0, %c0_i32 : i32, i32
  }
}

</mosaic_0001>

<llo_original>
// kernel: tpu_custom_call.1
$region0: #{tpu_custom_call.1}
  #allocation0 [shape = 'u32[]', space=smem, size = 0x4, offset = 0x4, fixed_abs, tag = 'smem constant byte address 0x4 - core index']
  #allocation1 [shape = 'u32[72,128]{1,0:T(1,128)}', space=vmem, size = 0x9000, scoped, tag = 'internal scratch']
  #allocation2 [shape = 'f32[1,1]{1,0:T(1,128)S(1)}', space=vmem, size = 0x200, scoped, tag = 'scoped memory for tpu_custom_call.1']
  %s0 = inlined_call_operand.hbm [shape: f32[16,16], index: 0, kind: input, shape index: {}]
  %s1 = inlined_call_operand.hbm [shape: f32[16,32], index: 1, kind: input, shape index: {}]
  %s2 = inlined_call_operand.hbm [shape: f32[16,16,32], index: 2, kind: input, shape index: {}]
  %s3 = inlined_call_operand.hbm [shape: f32[32,32], index: 3, kind: input, shape index: {}]
  %s4 = inlined_call_operand.hbm [shape: f32[1,32], index: 4, kind: input, shape index: {}]
  %s5 = inlined_call_operand.hbm [shape: f32[32,32], index: 5, kind: input, shape index: {}]
  %s6 = inlined_call_operand.vmem [shape: f32[1,32], index: 6, kind: input, shape index: {}]
  %s7 = inlined_call_operand.vmem [shape: f32[1,32], index: 7, kind: input, shape index: {}]
  %s8 = inlined_call_operand.<no memory space> [shape: f32[1,1], index: 8, kind: input, shape index: {}]
  %s9 = inlined_call_operand.hbm [shape: f32[3,16,32], index: 9, kind: input, shape index: {}]
  %s10 = inlined_call_operand.hbm [shape: f32[3,32,32], index: 10, kind: input, shape index: {}]
  %s11 = inlined_call_operand.hbm [shape: f32[3,32,32], index: 11, kind: input, shape index: {}]
  %s12 = inlined_call_operand.vmem [shape: f32[3,1,32], index: 12, kind: input, shape index: {}]
  %s13 = inlined_call_operand.vmem [shape: f32[3,1,32], index: 13, kind: input, shape index: {}]
  %s14 = inlined_call_operand.hbm [shape: f32[16,32], index: 14, kind: output, shape index: {}]
  %s15 = sld [smem:[#allocation0]]
  $region125: #{tpu_custom_call.1} parent=0
    _
  %s17 = ssub.s32 1, %s15
  %s18 = scalar_select 0, %s17, %s15
  %v19 = vstv %s8
  %20 = vst [vmem:[#allocation2] sm:$0x1] %v19
  $region1: #{tpu_custom_call.1} parent=0
    #allocation3 [shape = 'u8[8192]{0}', space=vmem, size = 0x2000, scoped, tag = 'input window, operand 0']
    #allocation4 [shape = 's32[2]{0}', space=sflag, size = 0x8, scoped, tag = 'scoped memory for tpu_custom_call.1']
    #allocation5 [shape = 's32[2]{0}', space=sflag, size = 0x8, scoped, tag = 'scoped memory for tpu_custom_call.1']
    #allocation6 [shape = 'u8[8192]{0}', space=vmem, size = 0x2000, scoped, tag = 'input window, operand 1']
    #allocation7 [shape = 's32[2]{0}', space=sflag, size = 0x8, scoped, tag = 'scoped memory for tpu_custom_call.1']
    #allocation8 [shape = 'u8[131072]{0}', space=vmem, size = 0x20000, scoped, tag = 'input window, operand 2']
    #allocation9 [shape = 'u8[16384]{0}', space=vmem, size = 0x4000, scoped, tag = 'input window, operand 3, single buffered']
    #allocation10 [shape = 's32[1]{0}', space=sflag, size = 0x4, scoped, tag = 'scoped memory for tpu_custom_call.1']
    #allocation11 [shape = 'u8[512]{0}', space=vmem, size = 0x400, scoped, tag = 'input window, operand 4, single buffered']
    #allocation12 [shape = 'u8[16384]{0}', space=vmem, size = 0x4000, scoped, tag = 'input window, operand 5, single buffered']
    #allocation13 [shape = 's32[1]{0}', space=sflag, size = 0x4, scoped, tag = 'scoped memory for tpu_custom_call.1']
    #allocation14 [shape = 'u8[24576]{0}', space=vmem, size = 0x6000, scoped, tag = 'input window, operand 9, single buffered']
    #allocation15 [shape = 'u8[49152]{0}', space=vmem, size = 0xc000, scoped, tag = 'input window, operand 10, single buffered']
    #allocation16 [shape = 's32[1]{0}', space=sflag, size = 0x4, scoped, tag = 'scoped memory for tpu_custom_call.1']
    #allocation17 [shape = 'u8[49152]{0}', space=vmem, size = 0xc000, scoped, tag = 'input window, operand 11, single buffered']
    #allocation18 [shape = 'u8[8192]{0}', space=vmem, size = 0x2000, scoped, tag = 'output window, operand 0']
    %21 = vsyncpa [#allocation4], 0
    %s22 = scalar_lea.sflag [#allocation4], 1
    %23 = vsyncpa %s22, 0
    %24 = vsyncpa [#allocation7], 0
    %s25 = scalar_lea.sflag [#allocation7], 1
    %26 = vsyncpa %s25, 0
    %27 = vsyncpa [#allocation10], 0
    %28 = vsyncpa [#allocation13], 0
    %29 = vsyncpa [#allocation16], 0
    %30 = vsyncpa [#allocation5], 0
    %s31 = scalar_lea.sflag [#allocation5], 1
    %32 = vsyncpa %s31, 0
    loop: start=0, step=1, limit=4
    $region2: #{tpu_custom_call.1} parent=1 // loop_pre_header
      _
    $region3: #{tpu_custom_call.1} parent=1 // loop_header
      %s34 = sphi 0, %s38
      %p35 = scmp.ge.s32.totalorder %s34, 4
      %s44 = sphi 0, %s46
      %s47 = sphi 0, %s44
      %s48 = sphi 0, %s47
      %s64 = sphi 0, %s48
      %s70 = sphi 0, %s72
      %s73 = sphi 0, %s70
      %s74 = sphi 0, %s73
      %s90 = sphi 0, %s74
      %s96 = sphi 0, %s98
      %s99 = sphi 0, %s96
      %s100 = sphi 0, %s99
      %s116 = sphi 0, %s100
      %s120 = sphi 0, %s120
      %s122 = sphi 0, %s120
      %s123 = sphi 0, %s122
      %s137 = sphi 0, %s123
      %s141 = sphi 0, %s141
      %s143 = sphi 0, %s141
      %s144 = sphi 0, %s143
      %s158 = sphi 0, %s144
      %s162 = sphi 0, %s162
      %s164 = sphi 0, %s162
      %s165 = sphi 0, %s164
      %s179 = sphi 0, %s165
      %s183 = sphi 0, %s183
      %s185 = sphi 0, %s183
      %s186 = sphi 0, %s185
      %s200 = sphi 0, %s186
      %s204 = sphi 0, %s204
      %s206 = sphi 0, %s204
      %s207 = sphi 0, %s206
      %s221 = sphi 0, %s207
      %s225 = sphi 0, %s225
      %s227 = sphi 0, %s225
      %s228 = sphi 0, %s227
      %s242 = sphi 0, %s228
      %s246 = sphi 0, %s246
      %s248 = sphi 0, %s246
      %s249 = sphi 0, %s248
      %s263 = sphi 0, %s249
      %s267 = sphi 0, %s267
      %s269 = sphi 0, %s267
      %s270 = sphi 0, %s269
      %s284 = sphi 0, %s270
      %s288 = sphi 0, %s288
      %s290 = sphi 0, %s288
      %s291 = sphi 0, %s290
      %s305 = sphi 0, %s291
      %s309 = sphi 0, %s309
      %s311 = sphi 0, %s309
      %s312 = sphi 0, %s311
      %s326 = sphi 0, %s312
      %s330 = sphi 0, %s330
      %s332 = sphi 0, %s330
      %s333 = sphi 0, %s332
      %s347 = sphi 0, %s333
      %s353 = sphi 0, %s355
      %s356 = sphi 0, %s353
      %s357 = sphi 0, %s356
      %s373 = sphi 0, %s357
    $region4: #{tpu_custom_call.1} parent=1 // loop_header_branch
      %37 = sbr.rel (%p35) target = $region8
    $region5: #{tpu_custom_call.1} parent=1 // loop_body
      %s39 = ssub.s32 %s34, 1
      %s40 = ssub.s32 %s34, 2
      %s41 = sadd.s32 %s34, 1
      %s42 = ssub.s32 %s34, %s41
      %p43 = scmp.eq.s32.totalorder %s42, 0
      %s45 = sadd.s32 %s44, 1
      %s46 = scalar_select %p43, %s44, %s45
      %p49 = pneg %p43
      %p50 = scmp.eq.s32.totalorder %s34, 1
      %p51 = por %p49, %p50
      %p52 = scmp.ne.s32.totalorder %s44, %s47
      %p53 = scmp.eq.s32.totalorder %s34, 0
      %p54 = por %p52, %p53
      %p55 = scmp.ne.s32.totalorder %s44, %s47
      %p56 = scmp.eq.s32.totalorder %s39, 1
      %p57 = por %p55, %p56
      %p58 = scmp.ne.s32.totalorder %s47, %s48
      %p59 = scmp.eq.s32.totalorder %s39, 0
      %p60 = por %p58, %p59
      %p61 = scmp.ne.s32.totalorder %s47, %s48
      %p62 = scmp.eq.s32.totalorder %s40, 1
      %p63 = por %p61, %p62
      %p65 = scmp.ne.s32.totalorder %s48, %s64
      %p66 = scmp.eq.s32.totalorder %s40, 0
      %p67 = por %p65, %p66
      %s68 = ssub.s32 %s34, %s41
      %p69 = scmp.eq.s32.totalorder %s68, 0
      %s71 = sadd.s32 %s70, 1
      %s72 = scalar_select %p69, %s70, %s71
      %p75 = pneg %p69
      %p76 = scmp.eq.s32.totalorder %s34, 1
      %p77 = por %p75, %p76
      %p78 = scmp.ne.s32.totalorder %s70, %s73
      %p79 = scmp.eq.s32.totalorder %s34, 0
      %p80 = por %p78, %p79
      %p81 = scmp.ne.s32.totalorder %s70, %s73
      %p82 = scmp.eq.s32.totalorder %s39, 1
      %p83 = por %p81, %p82
      %p84 = scmp.ne.s32.totalorder %s73, %s74
      %p85 = scmp.eq.s32.totalorder %s39, 0
      %p86 = por %p84, %p85
      %p87 = scmp.ne.s32.totalorder %s73, %s74
      %p88 = scmp.eq.s32.totalorder %s40, 1
      %p89 = por %p87, %p88
      %p91 = scmp.ne.s32.totalorder %s74, %s90
      %p92 = scmp.eq.s32.totalorder %s40, 0
      %p93 = por %p91, %p92
      %s94 = ssub.s32 %s34, %s41
      %p95 = scmp.eq.s32.totalorder %s94, 0
      %s97 = sadd.s32 %s96, 1
      %s98 = scalar_select %p95, %s96, %s97
      %p101 = pneg %p95
      %p102 = scmp.eq.s32.totalorder %s34, 1
      %p103 = por %p101, %p102
      %p104 = scmp.ne.s32.totalorder %s96, %s99
      %p105 = scmp.eq.s32.totalorder %s34, 0
      %p106 = por %p104, %p105
      %p107 = scmp.ne.s32.totalorder %s96, %s99
      %p108 = scmp.eq.s32.totalorder %s39, 1
      %p109 = por %p107, %p108
      %p110 = scmp.ne.s32.totalorder %s99, %s100
      %p111 = scmp.eq.s32.totalorder %s39, 0
      %p112 = por %p110, %p111
      %p113 = scmp.ne.s32.totalorder %s99, %s100
      %p114 = scmp.eq.s32.totalorder %s40, 1
      %p115 = por %p113, %p114
      %p117 = scmp.ne.s32.totalorder %s100, %s116
      %p118 = scmp.eq.s32.totalorder %s40, 0
      %p119 = por %p117, %p118
      %s121 = sadd.s32 %s120, 1
      %p124 = scmp.eq.s32.totalorder %s34, 1
      %p125 = scmp.ne.s32.totalorder %s120, %s122
      %p126 = scmp.eq.s32.totalorder %s34, 0
      %p127 = por %p125, %p126
      %p128 = scmp.ne.s32.totalorder %s120, %s122
      %p129 = scmp.eq.s32.totalorder %s39, 1
      %p130 = por %p128, %p129
      %p131 = scmp.ne.s32.totalorder %s122, %s123
      %p132 = scmp.eq.s32.totalorder %s39, 0
      %p133 = por %p131, %p132
      %p134 = scmp.ne.s32.totalorder %s122, %s123
      %p135 = scmp.eq.s32.totalorder %s40, 1
      %p136 = por %p134, %p135
      %p138 = scmp.ne.s32.totalorder %s123, %s137
      %p139 = scmp.eq.s32.totalorder %s40, 0
      %p140 = por %p138, %p139
      %s142 = sadd.s32 %s141, 1
      %p145 = scmp.eq.s32.totalorder %s34, 1
      %p146 = scmp.ne.s32.totalorder %s141, %s143
      %p147 = scmp.eq.s32.totalorder %s34, 0
      %p148 = por %p146, %p147
      %p149 = scmp.ne.s32.totalorder %s141, %s143
      %p150 = scmp.eq.s32.totalorder %s39, 1
      %p151 = por %p149, %p150
      %p152 = scmp.ne.s32.totalorder %s143, %s144
      %p153 = scmp.eq.s32.totalorder %s39, 0
      %p154 = por %p152, %p153
      %p155 = scmp.ne.s32.totalorder %s143, %s144
      %p156 = scmp.eq.s32.totalorder %s40, 1
      %p157 = por %p155, %p156
      %p159 = scmp.ne.s32.totalorder %s144, %s158
      %p160 = scmp.eq.s32.totalorder %s40, 0
      %p161 = por %p159, %p160
      %s163 = sadd.s32 %s162, 1
      %p166 = scmp.eq.s32.totalorder %s34, 1
      %p167 = scmp.ne.s32.totalorder %s162, %s164
      %p168 = scmp.eq.s32.totalorder %s34, 0
      %p169 = por %p167, %p168
      %p170 = scmp.ne.s32.totalorder %s162, %s164
      %p171 = scmp.eq.s32.totalorder %s39, 1
      %p172 = por %p170, %p171
      %p173 = scmp.ne.s32.totalorder %s164, %s165
      %p174 = scmp.eq.s32.totalorder %s39, 0
      %p175 = por %p173, %p174
      %p176 = scmp.ne.s32.totalorder %s164, %s165
      %p177 = scmp.eq.s32.totalorder %s40, 1
      %p178 = por %p176, %p177
      %p180 = scmp.ne.s32.totalorder %s165, %s179
      %p181 = scmp.eq.s32.totalorder %s40, 0
      %p182 = por %p180, %p181
      %s184 = sadd.s32 %s183, 1
      %p187 = scmp.eq.s32.totalorder %s34, 1
      %p188 = scmp.ne.s32.totalorder %s183, %s185
      %p189 = scmp.eq.s32.totalorder %s34, 0
      %p190 = por %p188, %p189
      %p191 = scmp.ne.s32.totalorder %s183, %s185
      %p192 = scmp.eq.s32.totalorder %s39, 1
      %p193 = por %p191, %p192
      %p194 = scmp.ne.s32.totalorder %s185, %s186
      %p195 = scmp.eq.s32.totalorder %s39, 0
      %p196 = por %p194, %p195
      %p197 = scmp.ne.s32.totalorder %s185, %s186
      %p198 = scmp.eq.s32.totalorder %s40, 1
      %p199 = por %p197, %p198
      %p201 = scmp.ne.s32.totalorder %s186, %s200
      %p202 = scmp.eq.s32.totalorder %s40, 0
      %p203 = por %p201, %p202
      %s205 = sadd.s32 %s204, 1
      %p208 = scmp.eq.s32.totalorder %s34, 1
      %p209 = scmp.ne.s32.totalorder %s204, %s206
      %p210 = scmp.eq.s32.totalorder %s34, 0
      %p211 = por %p209, %p210
      %p212 = scmp.ne.s32.totalorder %s204, %s206
      %p213 = scmp.eq.s32.totalorder %s39, 1
      %p214 = por %p212, %p213
      %p215 = scmp.ne.s32.totalorder %s206, %s207
      %p216 = scmp.eq.s32.totalorder %s39, 0
      %p217 = por %p215, %p216
      %p218 = scmp.ne.s32.totalorder %s206, %s207
      %p219 = scmp.eq.s32.totalorder %s40, 1
      %p220 = por %p218, %p219
      %p222 = scmp.ne.s32.totalorder %s207, %s221
      %p223 = scmp.eq.s32.totalorder %s40, 0
      %p224 = por %p222, %p223
      %s226 = sadd.s32 %s225, 1
      %p229 = scmp.eq.s32.totalorder %s34, 1
      %p230 = scmp.ne.s32.totalorder %s225, %s227
      %p231 = scmp.eq.s32.totalorder %s34, 0
      %p232 = por %p230, %p231
      %p233 = scmp.ne.s32.totalorder %s225, %s227
      %p234 = scmp.eq.s32.totalorder %s39, 1
      %p235 = por %p233, %p234
      %p236 = scmp.ne.s32.totalorder %s227, %s228
      %p237 = scmp.eq.s32.totalorder %s39, 0
      %p238 = por %p236, %p237
      %p239 = scmp.ne.s32.totalorder %s227, %s228
      %p240 = scmp.eq.s32.totalorder %s40, 1
      %p241 = por %p239, %p240
      %p243 = scmp.ne.s32.totalorder %s228, %s242
      %p244 = scmp.eq.s32.totalorder %s40, 0
      %p245 = por %p243, %p244
      %s247 = sadd.s32 %s246, 1
      %p250 = scmp.eq.s32.totalorder %s34, 1
      %p251 = scmp.ne.s32.totalorder %s246, %s248
      %p252 = scmp.eq.s32.totalorder %s34, 0
      %p253 = por %p251, %p252
      %p254 = scmp.ne.s32.totalorder %s246, %s248
      %p255 = scmp.eq.s32.totalorder %s39, 1
      %p256 = por %p254, %p255
      %p257 = scmp.ne.s32.totalorder %s248, %s249
      %p258 = scmp.eq.s32.totalorder %s39, 0
      %p259 = por %p257, %p258
      %p260 = scmp.ne.s32.totalorder %s248, %s249
      %p261 = scmp.eq.s32.totalorder %s40, 1
      %p262 = por %p260, %p261
      %p264 = scmp.ne.s32.totalorder %s249, %s263
      %p265 = scmp.eq.s32.totalorder %s40, 0
      %p266 = por %p264, %p265
      %s268 = sadd.s32 %s267, 1
      %p271 = scmp.eq.s32.totalorder %s34, 1
      %p272 = scmp.ne.s32.totalorder %s267, %s269
      %p273 = scmp.eq.s32.totalorder %s34, 0
      %p274 = por %p272, %p273
      %p275 = scmp.ne.s32.totalorder %s267, %s269
      %p276 = scmp.eq.s32.totalorder %s39, 1
      %p277 = por %p275, %p276
      %p278 = scmp.ne.s32.totalorder %s269, %s270
      %p279 = scmp.eq.s32.totalorder %s39, 0
      %p280 = por %p278, %p279
      %p281 = scmp.ne.s32.totalorder %s269, %s270
      %p282 = scmp.eq.s32.totalorder %s40, 1
      %p283 = por %p281, %p282
      %p285 = scmp.ne.s32.totalorder %s270, %s284
      %p286 = scmp.eq.s32.totalorder %s40, 0
      %p287 = por %p285, %p286
      %s289 = sadd.s32 %s288, 1
      %p292 = scmp.eq.s32.totalorder %s34, 1
      %p293 = scmp.ne.s32.totalorder %s288, %s290
      %p294 = scmp.eq.s32.totalorder %s34, 0
      %p295 = por %p293, %p294
      %p296 = scmp.ne.s32.totalorder %s288, %s290
      %p297 = scmp.eq.s32.totalorder %s39, 1
      %p298 = por %p296, %p297
      %p299 = scmp.ne.s32.totalorder %s290, %s291
      %p300 = scmp.eq.s32.totalorder %s39, 0
      %p301 = por %p299, %p300
      %p302 = scmp.ne.s32.totalorder %s290, %s291
      %p303 = scmp.eq.s32.totalorder %s40, 1
      %p304 = por %p302, %p303
      %p306 = scmp.ne.s32.totalorder %s291, %s305
      %p307 = scmp.eq.s32.totalorder %s40, 0
      %p308 = por %p306, %p307
      %s310 = sadd.s32 %s309, 1
      %p313 = scmp.eq.s32.totalorder %s34, 1
      %p314 = scmp.ne.s32.totalorder %s309, %s311
      %p315 = scmp.eq.s32.totalorder %s34, 0
      %p316 = por %p314, %p315
      %p317 = scmp.ne.s32.totalorder %s309, %s311
      %p318 = scmp.eq.s32.totalorder %s39, 1
      %p319 = por %p317, %p318
      %p320 = scmp.ne.s32.totalorder %s311, %s312
      %p321 = scmp.eq.s32.totalorder %s39, 0
      %p322 = por %p320, %p321
      %p323 = scmp.ne.s32.totalorder %s311, %s312
      %p324 = scmp.eq.s32.totalorder %s40, 1
      %p325 = por %p323, %p324
      %p327 = scmp.ne.s32.totalorder %s312, %s326
      %p328 = scmp.eq.s32.totalorder %s40, 0
      %p329 = por %p327, %p328
      %s331 = sadd.s32 %s330, 1
      %p334 = scmp.eq.s32.totalorder %s34, 1
      %p335 = scmp.ne.s32.totalorder %s330, %s332
      %p336 = scmp.eq.s32.totalorder %s34, 0
      %p337 = por %p335, %p336
      %p338 = scmp.ne.s32.totalorder %s330, %s332
      %p339 = scmp.eq.s32.totalorder %s39, 1
      %p340 = por %p338, %p339
      %p341 = scmp.ne.s32.totalorder %s332, %s333
      %p342 = scmp.eq.s32.totalorder %s39, 0
      %p343 = por %p341, %p342
      %p344 = scmp.ne.s32.totalorder %s332, %s333
      %p345 = scmp.eq.s32.totalorder %s40, 1
      %p346 = por %p344, %p345
      %p348 = scmp.ne.s32.totalorder %s333, %s347
      %p349 = scmp.eq.s32.totalorder %s40, 0
      %p350 = por %p348, %p349
      %s351 = ssub.s32 %s34, %s41
      %p352 = scmp.eq.s32.totalorder %s351, 0
      %s354 = sadd.s32 %s353, 1
      %s355 = scalar_select %p352, %s353, %s354
      %p358 = pneg %p352
      %p359 = scmp.eq.s32.totalorder %s34, 1
      %p360 = por %p358, %p359
      %p361 = scmp.ne.s32.totalorder %s353, %s356
      %p362 = scmp.eq.s32.totalorder %s34, 0
      %p363 = por %p361, %p362
      %p364 = scmp.ne.s32.totalorder %s353, %s356
      %p365 = scmp.eq.s32.totalorder %s39, 1
      %p366 = por %p364, %p365
      %p367 = scmp.ne.s32.totalorder %s356, %s357
      %p368 = scmp.eq.s32.totalorder %s39, 0
      %p369 = por %p367, %p368
      %p370 = scmp.ne.s32.totalorder %s356, %s357
      %p371 = scmp.eq.s32.totalorder %s40, 1
      %p372 = por %p370, %p371
      %p374 = scmp.ne.s32.totalorder %s357, %s373
      %p375 = scmp.eq.s32.totalorder %s40, 0
      %p376 = por %p374, %p375
      %p377 = scmp.le.s32.totalorder 1, %s34
      %p378 = scmp.lt.s32.totalorder %s34, 3
      %p379 = pnand %p377, %p378
      %p380 = pneg %p379
      // Predicated region
      $region9: #{tpu_custom_call.1} parent=5 // pred_check
        _
      $region10: #{tpu_custom_call.1} parent=5 // pred_check_branch
        %382 = sbr.rel (%p379) target = $region12
      $region11: #{tpu_custom_call.1} parent=5 // pred_region
        %s383 = ssub.s32 %s34, 1
        // Predicated region
        $region13: #{tpu_custom_call.1} parent=11 // pred_check
          %p384 = pneg %p133
        $region14: #{tpu_custom_call.1} parent=11 // pred_check_branch
          %386 = sbr.rel (%p384) target = $region16
        $region15: #{tpu_custom_call.1} parent=11 // pred_region
          %388 = vsyncadd [#allocation10], 0
          %s389 = sshll.u32 %s3, 4
          %s390 = int_to_ptr.hbm [resolvable:$true] %s389
          %s391 = sshll.u32 [#allocation9], 4
          %s392 = int_to_ptr.vmem [resolvable:$true] %s391
          %397 = dma.hbm_to_vmem [thread:$0]  %s390, 512, %s392, [#allocation10], 128, 128, 8
        $region16: #{tpu_custom_call.1} parent=11 // pred_fallthru
          _
        // Predicated region
        $region17: #{tpu_custom_call.1} parent=11 // pred_check
          %p398 = pneg %p154
        $region18: #{tpu_custom_call.1} parent=11 // pred_check_branch
          %400 = sbr.rel (%p398) target = $region20
        $region19: #{tpu_custom_call.1} parent=11 // pred_region
          %402 = vsyncadd [#allocation10], 0
          %s404 = sshll.u32 %s4, 4
          %s405 = int_to_ptr.hbm [resolvable:$true] %s404
          %s406 = sshll.u32 [#allocation11], 4
          %s407 = int_to_ptr.vmem [resolvable:$true] %s406
          %409 = dma.hbm_to_vmem [thread:$0]  %s405, 16, %s407, [#allocation10]
        $region20: #{tpu_custom_call.1} parent=11 // pred_fallthru
          _
        // Predicated region
        $region21: #{tpu_custom_call.1} parent=11 // pred_check
          %p410 = pneg %p175
        $region22: #{tpu_custom_call.1} parent=11 // pred_check_branch
          %412 = sbr.rel (%p410) target = $region24
        $region23: #{tpu_custom_call.1} parent=11 // pred_region
          %414 = vsyncadd [#allocation13], 0
          %s415 = sshll.u32 %s5, 4
          %s416 = int_to_ptr.hbm [resolvable:$true] %s415
          %s417 = sshll.u32 [#allocation12], 4
          %s418 = int_to_ptr.vmem [resolvable:$true] %s417
          %423 = dma.hbm_to_vmem [thread:$0]  %s416, 512, %s418, [#allocation13], 128, 128, 8
        $region24: #{tpu_custom_call.1} parent=11 // pred_fallthru
          _
        // Predicated region
        $region25: #{tpu_custom_call.1} parent=11 // pred_check
          %p424 = pneg %p196
        $region26: #{tpu_custom_call.1} parent=11 // pred_check_branch
          %426 = sbr.rel (%p424) target = $region28
        $region27: #{tpu_custom_call.1} parent=11 // pred_region
          _
        $region28: #{tpu_custom_call.1} parent=11 // pred_fallthru
          _
        // Predicated region
        $region29: #{tpu_custom_call.1} parent=11 // pred_check
          %p427 = pneg %p217
        $region30: #{tpu_custom_call.1} parent=11 // pred_check_branch
          %429 = sbr.rel (%p427) target = $region32
        $region31: #{tpu_custom_call.1} parent=11 // pred_region
          _
        $region32: #{tpu_custom_call.1} parent=11 // pred_fallthru
          _
        // Predicated region
        $region33: #{tpu_custom_call.1} parent=11 // pred_check
          %p430 = pneg %p238
        $region34: #{tpu_custom_call.1} parent=11 // pred_check_branch
          %432 = sbr.rel (%p430) target = $region36
        $region35: #{tpu_custom_call.1} parent=11 // pred_region
          _
        $region36: #{tpu_custom_call.1} parent=11 // pred_fallthru
          _
        // Predicated region
        $region37: #{tpu_custom_call.1} parent=11 // pred_check
          %p433 = pneg %p259
        $region38: #{tpu_custom_call.1} parent=11 // pred_check_branch
          %435 = sbr.rel (%p433) target = $region40
        $region39: #{tpu_custom_call.1} parent=11 // pred_region
          %437 = vsyncadd [#allocation13], 0
          %s438 = sshll.u32 %s9, 4
          %s439 = int_to_ptr.hbm [resolvable:$true] %s438
          %s440 = sshll.u32 [#allocation14], 4
          %s441 = int_to_ptr.vmem [resolvable:$true] %s440
          %446 = dma.hbm_to_vmem [thread:$0]  %s439, 768, %s441, [#allocation13], 128, 128, 8
        $region40: #{tpu_custom_call.1} parent=11 // pred_fallthru
          _
        // Predicated region
        $region41: #{tpu_custom_call.1} parent=11 // pred_check
          %p447 = pneg %p280
        $region42: #{tpu_custom_call.1} parent=11 // pred_check_branch
          %449 = sbr.rel (%p447) target = $region44
        $region43: #{tpu_custom_call.1} parent=11 // pred_region
          %451 = vsyncadd [#allocation16], 0
          %s452 = sshll.u32 %s10, 4
          %s453 = int_to_ptr.hbm [resolvable:$true] %s452
          %s454 = sshll.u32 [#allocation15], 4
          %s455 = int_to_ptr.vmem [resolvable:$true] %s454
          %460 = dma.hbm_to_vmem [thread:$0]  %s453, 1536, %s455, [#allocation16], 128, 128, 8
        $region44: #{tpu_custom_call.1} parent=11 // pred_fallthru
          _
        // Predicated region
        $region45: #{tpu_custom_call.1} parent=11 // pred_check
          %p461 = pneg %p301
        $region46: #{tpu_custom_call.1} parent=11 // pred_check_branch
          %463 = sbr.rel (%p461) target = $region48
        $region47: #{tpu_custom_call.1} parent=11 // pred_region
          %465 = vsyncadd [#allocation16], 0
          %s466 = sshll.u32 %s11, 4
          %s467 = int_to_ptr.hbm [resolvable:$true] %s466
          %s468 = sshll.u32 [#allocation17], 4
          %s469 = int_to_ptr.vmem [resolvable:$true] %s468
          %474 = dma.hbm_to_vmem [thread:$0]  %s467, 1536, %s469, [#allocation16], 128, 128, 8
        $region48: #{tpu_custom_call.1} parent=11 // pred_fallthru
          _
        // Predicated region
        $region49: #{tpu_custom_call.1} parent=11 // pred_check
          %p475 = pneg %p322
        $region50: #{tpu_custom_call.1} parent=11 // pred_check_branch
          %477 = sbr.rel (%p475) target = $region52
        $region51: #{tpu_custom_call.1} parent=11 // pred_region
          _
        $region52: #{tpu_custom_call.1} parent=11 // pred_fallthru
          _
        // Predicated region
        $region53: #{tpu_custom_call.1} parent=11 // pred_check
          %p478 = pneg %p343
        $region54: #{tpu_custom_call.1} parent=11 // pred_check_branch
          %480 = sbr.rel (%p478) target = $region56
        $region55: #{tpu_custom_call.1} parent=11 // pred_region
          _
        $region56: #{tpu_custom_call.1} parent=11 // pred_fallthru
          _
      $region12: #{tpu_custom_call.1} parent=5 // pred_fallthru
        _
      %p481 = scmp.lt.s32.totalorder %s34, 2
      // Predicated region
      $region57: #{tpu_custom_call.1} parent=5 // pred_check
        %p482 = pneg %p481
      $region58: #{tpu_custom_call.1} parent=5 // pred_check_branch
        %484 = sbr.rel (%p482) target = $region60
      $region59: #{tpu_custom_call.1} parent=5 // pred_region
        // Predicated region
        $region61: #{tpu_custom_call.1} parent=59 // pred_check
          %p485 = pneg %p54
        $region62: #{tpu_custom_call.1} parent=59 // pred_check_branch
          %487 = sbr.rel (%p485) target = $region64
        $region63: #{tpu_custom_call.1} parent=59 // pred_region
          %s488 = sand.u32 %s44, 1
          %s489 = scalar_lea.sflag [#allocation4], %s488
          %s490 = sand.u32 %s44, 1
          %s491 = smul.addr %s490, 8
          %s492 = scalar_lea.vmem [#allocation3], %s491
          %494 = vsyncadd %s489, 0
          %s495 = smul.addr %s34, 8
          %s496 = scalar_lea.hbm %s0, %s495
          %s498 = sshll.u32 %s496, 4
          %s499 = int_to_ptr.hbm [resolvable:$true] %s498
          %s500 = sshll.u32 %s492, 4
          %s501 = int_to_ptr.vmem [resolvable:$true] %s500
          %503 = dma.hbm_to_vmem [thread:$0]  %s499, 128, %s501, %s489
        $region64: #{tpu_custom_call.1} parent=59 // pred_fallthru
          _
        // Predicated region
        $region65: #{tpu_custom_call.1} parent=59 // pred_check
          %p504 = pneg %p80
        $region66: #{tpu_custom_call.1} parent=59 // pred_check_branch
          %506 = sbr.rel (%p504) target = $region68
        $region67: #{tpu_custom_call.1} parent=59 // pred_region
          %s507 = sand.u32 %s34, 1
          %s508 = scalar_lea.sflag [#allocation7], %s507
          %s509 = sand.u32 %s70, 1
          %s510 = smul.addr %s509, 8
          %s511 = scalar_lea.vmem [#allocation6], %s510
          %513 = vsyncadd %s508, 0
          %s514 = smul.addr %s34, 8
          %s515 = scalar_lea.hbm %s1, %s514
          %s517 = sshll.u32 %s515, 4
          %s518 = int_to_ptr.hbm [resolvable:$true] %s517
          %s519 = sshll.u32 %s511, 4
          %s520 = int_to_ptr.vmem [resolvable:$true] %s519
          %522 = dma.hbm_to_vmem [thread:$0]  %s518, 128, %s520, %s508
        $region68: #{tpu_custom_call.1} parent=59 // pred_fallthru
          _
        // Predicated region
        $region69: #{tpu_custom_call.1} parent=59 // pred_check
          %p523 = pneg %p106
        $region70: #{tpu_custom_call.1} parent=59 // pred_check_branch
          %525 = sbr.rel (%p523) target = $region72
        $region71: #{tpu_custom_call.1} parent=59 // pred_region
          %s526 = sand.u32 %s34, 1
          %s527 = scalar_lea.sflag [#allocation7], %s526
          %s528 = sand.u32 %s96, 1
          %s529 = smul.addr %s528, 128
          %s530 = scalar_lea.vmem [#allocation8], %s529
          %s531 = smul.u32 8, %s34
          %533 = vsyncadd %s527, 0
          %s534 = smul.addr %s531, 2
          %s535 = smul.addr %s534, 8
          %s536 = scalar_lea.hbm %s2, %s535
          %s537 = sshll.u32 %s536, 4
          %s538 = int_to_ptr.hbm [resolvable:$true] %s537
          %s539 = sshll.u32 %s530, 4
          %s540 = int_to_ptr.vmem [resolvable:$true] %s539
          %545 = dma.hbm_to_vmem [thread:$0]  %s538, 2048, %s540, %s527, 128, 128, 8
        $region72: #{tpu_custom_call.1} parent=59 // pred_fallthru
          _
      $region60: #{tpu_custom_call.1} parent=5 // pred_fallthru
        _
      %p546 = scmp.le.s32.totalorder 1, %s34
      %p547 = scmp.lt.s32.totalorder %s34, 3
      %p548 = pnand %p546, %p547
      %p549 = pneg %p548
      // Predicated region
      $region73: #{tpu_custom_call.1} parent=5 // pred_check
        _
      $region74: #{tpu_custom_call.1} parent=5 // pred_check_branch
        %551 = sbr.rel (%p548) target = $region76
      $region75: #{tpu_custom_call.1} parent=5 // pred_region
        %s552 = ssub.s32 %s34, 1
        %s553 = sand.u32 %s47, 1
        %s554 = scalar_lea.sflag [#allocation4], %s553
        %s555 = sand.u32 %s47, 1
        %s556 = smul.addr %s555, 8
        %s557 = scalar_lea.vmem [#allocation3], %s556
        // Predicated region
        $region77: #{tpu_custom_call.1} parent=75 // pred_check
          %p558 = pneg %p60
        $region78: #{tpu_custom_call.1} parent=75 // pred_check_branch
          %560 = sbr.rel (%p558) target = $region80
        $region79: #{tpu_custom_call.1} parent=75 // pred_region
          %562 = dma.done %s554, 128
        $region80: #{tpu_custom_call.1} parent=75 // pred_fallthru
          _
        %s563 = sand.u32 %s39, 1
        %s564 = scalar_lea.sflag [#allocation7], %s563
        %s565 = sand.u32 %s73, 1
        %s566 = smul.addr %s565, 8
        %s567 = scalar_lea.vmem [#allocation6], %s566
        // Predicated region
        $region81: #{tpu_custom_call.1} parent=75 // pred_check
          %p568 = pneg %p86
        $region82: #{tpu_custom_call.1} parent=75 // pred_check_branch
          %570 = sbr.rel (%p568) target = $region84
        $region83: #{tpu_custom_call.1} parent=75 // pred_region
          %572 = dma.done %s564, 128
        $region84: #{tpu_custom_call.1} parent=75 // pred_fallthru
          _
        %s573 = sand.u32 %s39, 1
        %s574 = scalar_lea.sflag [#allocation7], %s573
        %s575 = sand.u32 %s99, 1
        %s576 = smul.addr %s575, 128
        %s577 = scalar_lea.vmem [#allocation8], %s576
        // Predicated region
        $region85: #{tpu_custom_call.1} parent=75 // pred_check
          %p578 = pneg %p112
        $region86: #{tpu_custom_call.1} parent=75 // pred_check_branch
          %580 = sbr.rel (%p578) target = $region88
        $region87: #{tpu_custom_call.1} parent=75 // pred_region
          %582 = dma.done %s574, 2048
        $region88: #{tpu_custom_call.1} parent=75 // pred_fallthru
          _
        // Predicated region
        $region89: #{tpu_custom_call.1} parent=75 // pred_check
          %p583 = pneg %p133
        $region90: #{tpu_custom_call.1} parent=75 // pred_check_branch
          %585 = sbr.rel (%p583) target = $region92
        $region91: #{tpu_custom_call.1} parent=75 // pred_region
          %587 = dma.done [#allocation10], 512
        $region92: #{tpu_custom_call.1} parent=75 // pred_fallthru
          _
        // Predicated region
        $region93: #{tpu_custom_call.1} parent=75 // pred_check
          %p588 = pneg %p154
        $region94: #{tpu_custom_call.1} parent=75 // pred_check_branch
          %590 = sbr.rel (%p588) target = $region96
        $region95: #{tpu_custom_call.1} parent=75 // pred_region
          %592 = dma.done [#allocation10], 16
        $region96: #{tpu_custom_call.1} parent=75 // pred_fallthru
          _
        // Predicated region
        $region97: #{tpu_custom_call.1} parent=75 // pred_check
          %p593 = pneg %p175
        $region98: #{tpu_custom_call.1} parent=75 // pred_check_branch
          %595 = sbr.rel (%p593) target = $region100
        $region99: #{tpu_custom_call.1} parent=75 // pred_region
          %597 = dma.done [#allocation13], 512
        $region100: #{tpu_custom_call.1} parent=75 // pred_fallthru
          _
        // Predicated region
        $region101: #{tpu_custom_call.1} parent=75 // pred_check
          %p598 = pneg %p259
        $region102: #{tpu_custom_call.1} parent=75 // pred_check_branch
          %600 = sbr.rel (%p598) target = $region104
        $region103: #{tpu_custom_call.1} parent=75 // pred_region
          %602 = dma.done [#allocation13], 768
        $region104: #{tpu_custom_call.1} parent=75 // pred_fallthru
          _
        // Predicated region
        $region105: #{tpu_custom_call.1} parent=75 // pred_check
          %p603 = pneg %p280
        $region106: #{tpu_custom_call.1} parent=75 // pred_check_branch
          %605 = sbr.rel (%p603) target = $region108
        $region107: #{tpu_custom_call.1} parent=75 // pred_region
          %607 = dma.done [#allocation16], 1536
        $region108: #{tpu_custom_call.1} parent=75 // pred_fallthru
          _
        // Predicated region
        $region109: #{tpu_custom_call.1} parent=75 // pred_check
          %p608 = pneg %p301
        $region110: #{tpu_custom_call.1} parent=75 // pred_check_branch
          %610 = sbr.rel (%p608) target = $region112
        $region111: #{tpu_custom_call.1} parent=75 // pred_region
          %612 = dma.done [#allocation16], 1536
        $region112: #{tpu_custom_call.1} parent=75 // pred_fallthru
          _
        %s613 = sand.u32 %s47, 1
        %s614 = scalar_lea.sflag [#allocation4], %s613
        %s615 = sand.u32 %s47, 1
        %s616 = smul.addr %s615, 8
        %s617 = scalar_lea.vmem [#allocation3], %s616
        %p618 = pneg %p60
        %p619 = pneg %p57
        %s620 = sand.u32 %s39, 1
        %s621 = scalar_lea.sflag [#allocation7], %s620
        %s622 = sand.u32 %s73, 1
        %s623 = smul.addr %s622, 8
        %s624 = scalar_lea.vmem [#allocation6], %s623
        %p625 = pneg %p86
        %p626 = pneg %p83
        %s627 = sand.u32 %s39, 1
        %s628 = scalar_lea.sflag [#allocation7], %s627
        %s629 = sand.u32 %s99, 1
        %s630 = smul.addr %s629, 128
        %s631 = scalar_lea.vmem [#allocation8], %s630
        %p632 = pneg %p112
        %p633 = pneg %p109
        %p634 = pneg %p133
        %p635 = pneg %p130
        %p636 = pneg %p154
        %p637 = pneg %p151
        %p638 = pneg %p175
        %p639 = pneg %p172
        %p640 = pneg %p196
        %p641 = pneg %p193
        %p642 = pneg %p217
        %p643 = pneg %p214
        %p644 = pneg %p238
        %p645 = pneg %p235
        %p646 = pneg %p259
        %p647 = pneg %p256
        %p648 = pneg %p280
        %p649 = pneg %p277
        %p650 = pneg %p301
        %p651 = pneg %p298
        %p652 = pneg %p322
        %p653 = pneg %p319
        %p654 = pneg %p343
        %p655 = pneg %p340
        %p656 = pneg %p369
        %p657 = pneg %p366
        %s658 = sand.u32 %s356, 1
        %s659 = scalar_lea.sflag [#allocation5], %s658
        %s660 = sand.u32 %s356, 1
        %s661 = smul.addr %s660, 8
        %s662 = scalar_lea.vmem [#allocation18], %s661
        %s663 = smul.u32 8, %s39
        %v664 = vld [vmem:[%s557] sm:$0xff]
        %v665 = vld [vmem:[%s567] sm:$0xff]
        %v666 = vld [vmem:[%s577] sm:$0xff]
        %v667 = vld [vmem:[%s577 + $0x8] sm:$0xff]
        %v668 = vld [vmem:[%s577 + $0x10] sm:$0xff]
        %v669 = vld [vmem:[%s577 + $0x18] sm:$0xff]
        %v670 = vld [vmem:[%s577 + $0x20] sm:$0xff]
        %v671 = vld [vmem:[%s577 + $0x28] sm:$0xff]
        %v672 = vld [vmem:[%s577 + $0x30] sm:$0xff]
        %v673 = vld [vmem:[%s577 + $0x38] sm:$0xff]
        %v674 = vld [vmem:[%s577 + $0x40] sm:$0xff]
        %v675 = vld [vmem:[%s577 + $0x48] sm:$0xff]
        %v676 = vld [vmem:[%s577 + $0x50] sm:$0xff]
        %v677 = vld [vmem:[%s577 + $0x58] sm:$0xff]
        %v678 = vld [vmem:[%s577 + $0x60] sm:$0xff]
        %v679 = vld [vmem:[%s577 + $0x68] sm:$0xff]
        %v680 = vld [vmem:[%s577 + $0x70] sm:$0xff]
        %v681 = vld [vmem:[%s577 + $0x78] sm:$0xff]
        %v682 = vld [vmem:[#allocation9] sm:$0xff]
        %v683 = vld [vmem:[#allocation9 + $0x8] sm:$0xff]
        %v684 = vld [vmem:[#allocation9 + $0x10] sm:$0xff]
        %v685 = vld [vmem:[#allocation9 + $0x18] sm:$0xff]
        %vm686 = vcmask 261120
        %v688 = vsel %vm686, %v666, 0
        %v691 = vsel %vm686, %v667, 0
        %v694 = vsel %vm686, %v668, 0
        %v697 = vsel %vm686, %v669, 0
        %v700 = vsel %vm686, %v670, 0
        %v703 = vsel %vm686, %v671, 0
        %v706 = vsel %vm686, %v672, 0
        %v709 = vsel %vm686, %v673, 0
        %v712 = vsel %vm686, %v674, 0
        %v715 = vsel %vm686, %v675, 0
        %v718 = vsel %vm686, %v676, 0
        %v721 = vsel %vm686, %v677, 0
        %v724 = vsel %vm686, %v678, 0
        %v727 = vsel %vm686, %v679, 0
        %v730 = vsel %vm686, %v680, 0
        %v733 = vsel %vm686, %v681, 0
        %735 = vmatpush.msra.mxu0 0.0
        %736 = vmatpush.msra.mxu0 0.0
        %737 = vmatpush.msra.mxu0 0.0
        %738 = vmatpush.msra.mxu0 0.0
        %739 = vmatpush.msra.mxu0 0.0
        %740 = vmatpush.msra.mxu0 0.0
        %741 = vmatpush.msra.mxu0 0.0
        %742 = vmatpush.msra.mxu0 0.0
        %743 = vmatpush.msra.mxu0 0.0
        %744 = vmatpush.msra.mxu0 0.0
        %745 = vmatpush.msra.mxu0 0.0
        %746 = vmatpush.msra.mxu0 0.0
        %747 = vmatpush.msra.mxu0 %v685
        %748 = vmatpush.msra.mxu0 %v684
        %749 = vmatpush.msra.mxu0 %v683
        %750 = vmatpush.msra.mxu0 %v682
        %751 = vmatmul.f32.gmra.mxu0 %v688
        %v752 = vpop.f32.mrf.mxu0
        %v753 = vadd.f32 0.0, %v752
        %754 = vmatmul.f32.gmra.mxu0 %v691
        %v755 = vpop.f32.mrf.mxu0
        %v756 = vadd.f32 0.0, %v755
        %757 = vmatmul.f32.gmra.mxu0 %v694
        %v758 = vpop.f32.mrf.mxu0
        %v759 = vadd.f32 0.0, %v758
        %760 = vmatmul.f32.gmra.mxu0 %v697
        %v761 = vpop.f32.mrf.mxu0
        %v762 = vadd.f32 0.0, %v761
        %763 = vmatmul.f32.gmra.mxu0 %v700
        %v764 = vpop.f32.mrf.mxu0
        %v765 = vadd.f32 0.0, %v764
        %766 = vmatmul.f32.gmra.mxu0 %v703
        %v767 = vpop.f32.mrf.mxu0
        %v768 = vadd.f32 0.0, %v767
        %769 = vmatmul.f32.gmra.mxu0 %v706
        %v770 = vpop.f32.mrf.mxu0
        %v771 = vadd.f32 0.0, %v770
        %772 = vmatmul.f32.gmra.mxu0 %v709
        %v773 = vpop.f32.mrf.mxu0
        %v774 = vadd.f32 0.0, %v773
        %775 = vmatmul.f32.gmra.mxu0 %v712
        %v776 = vpop.f32.mrf.mxu0
        %v777 = vadd.f32 0.0, %v776
        %778 = vmatmul.f32.gmra.mxu0 %v715
        %v779 = vpop.f32.mrf.mxu0
        %v780 = vadd.f32 0.0, %v779
        %781 = vmatmul.f32.gmra.mxu0 %v718
        %v782 = vpop.f32.mrf.mxu0
        %v783 = vadd.f32 0.0, %v782
        %784 = vmatmul.f32.gmra.mxu0 %v721
        %v785 = vpop.f32.mrf.mxu0
        %v786 = vadd.f32 0.0, %v785
        %787 = vmatmul.f32.gmra.mxu0 %v724
        %v788 = vpop.f32.mrf.mxu0
        %v789 = vadd.f32 0.0, %v788
        %790 = vmatmul.f32.gmra.mxu0 %v727
        %v791 = vpop.f32.mrf.mxu0
        %v792 = vadd.f32 0.0, %v791
        %793 = vmatmul.f32.gmra.mxu0 %v730
        %v794 = vpop.f32.mrf.mxu0
        %v795 = vadd.f32 0.0, %v794
        %796 = vmatmul.f32.gmra.mxu0 %v733
        %v797 = vpop.f32.mrf.mxu0
        %v798 = vadd.f32 0.0, %v797
        %799 = vdwg.mxu0
        %v800 = vld [vmem:[#allocation11] sm:$0x1]
        %v802 = vperm.slane %v800, 0
        %v804 = vadd.f32 %v753, %v802
        %v805 = vadd.f32 %v756, %v802
        %v806 = vadd.f32 %v759, %v802
        %v807 = vadd.f32 %v762, %v802
        %v808 = vadd.f32 %v765, %v802
        %v809 = vadd.f32 %v768, %v802
        %v810 = vadd.f32 %v771, %v802
        %v811 = vadd.f32 %v774, %v802
        %v812 = vadd.f32 %v777, %v802
        %v813 = vadd.f32 %v780, %v802
        %v814 = vadd.f32 %v783, %v802
        %v815 = vadd.f32 %v786, %v802
        %v816 = vadd.f32 %v789, %v802
        %v817 = vadd.f32 %v792, %v802
        %v818 = vadd.f32 %v795, %v802
        %v819 = vadd.f32 %v798, %v802
        %v820 = vld [vmem:[#allocation12] sm:$0xff]
        %v821 = vld [vmem:[#allocation12 + $0x8] sm:$0xff]
        %v822 = vld [vmem:[#allocation12 + $0x10] sm:$0xff]
        %v823 = vld [vmem:[#allocation12 + $0x18] sm:$0xff]
        %v824 = vld [vmem:[%s6] sm:$0x1]
        %v826 = vperm.slane %v824, 0
        %v829 = vsel %vm686, %v665, 0
        %831 = vmatpush.msra.mxu0 0.0
        %832 = vmatpush.msra.mxu0 0.0
        %833 = vmatpush.msra.mxu0 0.0
        %834 = vmatpush.msra.mxu0 0.0
        %835 = vmatpush.msra.mxu0 0.0
        %836 = vmatpush.msra.mxu0 0.0
        %837 = vmatpush.msra.mxu0 0.0
        %838 = vmatpush.msra.mxu0 0.0
        %839 = vmatpush.msra.mxu0 0.0
        %840 = vmatpush.msra.mxu0 0.0
        %841 = vmatpush.msra.mxu0 0.0
        %842 = vmatpush.msra.mxu0 0.0
        %843 = vmatpush.msra.mxu0 %v823
        %844 = vmatpush.msra.mxu0 %v822
        %845 = vmatpush.msra.mxu0 %v821
        %846 = vmatpush.msra.mxu0 %v820
        %847 = vmatmul.f32.gmra.mxu0 %v829
        %v848 = vpop.f32.mrf.mxu0
        %v849 = vadd.f32 %v826, %v848
        %850 = vdwg.mxu0
        %v852 = vrot.slane %v849, 1
        %v853 = vrot.slane %v849, 2
        %v854 = vrot.slane %v849, 3
        %v855 = vrot.slane %v849, 4
        %v856 = vrot.slane %v849, 5
        %v857 = vrot.slane %v849, 6
        %v858 = vrot.slane %v849, 7
        %v859 = vperm.slane %v849, 0
        %v860 = vperm.slane %v852, 0
        %v861 = vperm.slane %v853, 0
        %v862 = vperm.slane %v854, 0
        %v863 = vperm.slane %v855, 0
        %v864 = vperm.slane %v856, 0
        %v865 = vperm.slane %v857, 0
        %v866 = vperm.slane %v858, 0
        %v875 = vadd.f32 %v804, %v859
        %v876 = vadd.f32 %v805, %v859
        %v877 = vadd.f32 %v806, %v860
        %v878 = vadd.f32 %v807, %v860
        %v879 = vadd.f32 %v808, %v861
        %v880 = vadd.f32 %v809, %v861
        %v881 = vadd.f32 %v810, %v862
        %v882 = vadd.f32 %v811, %v862
        %v883 = vadd.f32 %v812, %v863
        %v884 = vadd.f32 %v813, %v863
        %v885 = vadd.f32 %v814, %v864
        %v886 = vadd.f32 %v815, %v864
        %v887 = vadd.f32 %v816, %v865
        %v888 = vadd.f32 %v817, %v865
        %v889 = vadd.f32 %v818, %v866
        %v890 = vadd.f32 %v819, %v866
        %v891 = vtanh.pop %v875
        %v892 = vtanh.pop %v876
        %v893 = vtanh.pop %v877
        %v894 = vtanh.pop %v878
        %v895 = vtanh.pop %v879
        %v896 = vtanh.pop %v880
        %v897 = vtanh.pop %v881
        %v898 = vtanh.pop %v882
        %v899 = vtanh.pop %v883
        %v900 = vtanh.pop %v884
        %v901 = vtanh.pop %v885
        %v902 = vtanh.pop %v886
        %v903 = vtanh.pop %v887
        %v904 = vtanh.pop %v888
        %v905 = vtanh.pop %v889
        %v906 = vtanh.pop %v890
        %v907 = vld [vmem:[%s7] sm:$0x1]
        %v909 = vperm.slane %v907, 0
        %v911 = vmul.f32 %v891, %v909
        %v912 = vmul.f32 %v892, %v909
        %v913 = vmul.f32 %v893, %v909
        %v914 = vmul.f32 %v894, %v909
        %v915 = vmul.f32 %v895, %v909
        %v916 = vmul.f32 %v896, %v909
        %v917 = vmul.f32 %v897, %v909
        %v918 = vmul.f32 %v898, %v909
        %v919 = vmul.f32 %v899, %v909
        %v920 = vmul.f32 %v900, %v909
        %v921 = vmul.f32 %v901, %v909
        %v922 = vmul.f32 %v902, %v909
        %v923 = vmul.f32 %v903, %v909
        %v924 = vmul.f32 %v904, %v909
        %v925 = vmul.f32 %v905, %v909
        %v926 = vmul.f32 %v906, %v909
        %v927 = vsel %vm686, %v911, 0.0
        %928 = vadd.xlane.f32.xlu0 %v927
        %v929 = vpop.xlane.xlu0 %928
        %v930 = vsel %vm686, %v912, 0.0
        %931 = vadd.xlane.f32.xlu0 %v930
        %v932 = vpop.xlane.xlu0 %931
        %v933 = vsel %vm686, %v913, 0.0
        %934 = vadd.xlane.f32.xlu0 %v933
        %v935 = vpop.xlane.xlu0 %934
        %v936 = vsel %vm686, %v914, 0.0
        %937 = vadd.xlane.f32.xlu0 %v936
        %v938 = vpop.xlane.xlu0 %937
        %v939 = vsel %vm686, %v915, 0.0
        %940 = vadd.xlane.f32.xlu0 %v939
        %v941 = vpop.xlane.xlu0 %940
        %v942 = vsel %vm686, %v916, 0.0
        %943 = vadd.xlane.f32.xlu0 %v942
        %v944 = vpop.xlane.xlu0 %943
        %v945 = vsel %vm686, %v917, 0.0
        %946 = vadd.xlane.f32.xlu0 %v945
        %v947 = vpop.xlane.xlu0 %946
        %v948 = vsel %vm686, %v918, 0.0
        %949 = vadd.xlane.f32.xlu0 %v948
        %v950 = vpop.xlane.xlu0 %949
        %v951 = vsel %vm686, %v919, 0.0
        %952 = vadd.xlane.f32.xlu0 %v951
        %v953 = vpop.xlane.xlu0 %952
        %v954 = vsel %vm686, %v920, 0.0
        %955 = vadd.xlane.f32.xlu0 %v954
        %v956 = vpop.xlane.xlu0 %955
        %v957 = vsel %vm686, %v921, 0.0
        %958 = vadd.xlane.f32.xlu0 %v957
        %v959 = vpop.xlane.xlu0 %958
        %v960 = vsel %vm686, %v922, 0.0
        %961 = vadd.xlane.f32.xlu0 %v960
        %v962 = vpop.xlane.xlu0 %961
        %v963 = vsel %vm686, %v923, 0.0
        %964 = vadd.xlane.f32.xlu0 %v963
        %v965 = vpop.xlane.xlu0 %964
        %v966 = vsel %vm686, %v924, 0.0
        %967 = vadd.xlane.f32.xlu0 %v966
        %v968 = vpop.xlane.xlu0 %967
        %v969 = vsel %vm686, %v925, 0.0
        %970 = vadd.xlane.f32.xlu0 %v969
        %v971 = vpop.xlane.xlu0 %970
        %v972 = vsel %vm686, %v926, 0.0
        %973 = vadd.xlane.f32.xlu0 %v972
        %v974 = vpop.xlane.xlu0 %973
        %v975 = vld [vmem:[#allocation2] sm:$0x1]
        %v977 = vperm.slane %v975, 0
        %978 = vset.pattern.permute.xlu0 0
        %979 = vperm.xlu0 %978, %v977
        %v980 = vpop.permute.xlu0 %979
        %v982 = vadd.f32 %v929, %v980
        %v983 = vadd.f32 %v932, %v980
        %v984 = vadd.f32 %v935, %v980
        %v985 = vadd.f32 %v938, %v980
        %v986 = vadd.f32 %v941, %v980
        %v987 = vadd.f32 %v944, %v980
        %v988 = vadd.f32 %v947, %v980
        %v989 = vadd.f32 %v950, %v980
        %v990 = vadd.f32 %v953, %v980
        %v991 = vadd.f32 %v956, %v980
        %v992 = vadd.f32 %v959, %v980
        %v993 = vadd.f32 %v962, %v980
        %v994 = vadd.f32 %v965, %v980
        %v995 = vadd.f32 %v968, %v980
        %v996 = vadd.f32 %v971, %v980
        %v997 = vadd.f32 %v974, %v980
        %v1014 = vlaneseq
        %v1015 = vand.u32 %v1014, 127
        %v1016 = vperm.slane %v982, %v1015
        %v1017 = vadd.s32 %v1015, 4294967288
        %v1018 = vperm.slane %v983, %v1017
        %vm1019 = vcmask 130112
        %v1020 = vsel %vm1019, %v1018, %v1016
        %v1021 = vperm.slane %v984, %v1015
        %v1022 = vperm.slane %v985, %v1017
        %v1023 = vsel %vm1019, %v1022, %v1021
        %v1024 = vperm.slane %v986, %v1015
        %v1025 = vperm.slane %v987, %v1017
        %v1026 = vsel %vm1019, %v1025, %v1024
        %v1027 = vperm.slane %v988, %v1015
        %v1028 = vperm.slane %v989, %v1017
        %v1029 = vsel %vm1019, %v1028, %v1027
        %v1030 = vperm.slane %v990, %v1015
        %v1031 = vperm.slane %v991, %v1017
        %v1032 = vsel %vm1019, %v1031, %v1030
        %v1033 = vperm.slane %v992, %v1015
        %v1034 = vperm.slane %v993, %v1017
        %v1035 = vsel %vm1019, %v1034, %v1033
        %v1036 = vperm.slane %v994, %v1015
        %v1037 = vperm.slane %v995, %v1017
        %v1038 = vsel %vm1019, %v1037, %v1036
        %v1039 = vperm.slane %v996, %v1015
        %v1040 = vperm.slane %v997, %v1017
        %v1041 = vsel %vm1019, %v1040, %v1039
        %vm1042 = vcmask 1041409
        %v1043 = vsel %vm1042, %v1023, %v1020
        %vm1044 = vcmask 1042434
        %v1045 = vsel %vm1044, %v1026, %v1043
        %vm1046 = vcmask 1043459
        %v1047 = vsel %vm1046, %v1029, %v1045
        %vm1048 = vcmask 1044484
        %v1049 = vsel %vm1048, %v1032, %v1047
        %vm1050 = vcmask 1045509
        %v1051 = vsel %vm1050, %v1035, %v1049
        %vm1052 = vcmask 1046534
        %v1053 = vsel %vm1052, %v1038, %v1051
        %vm1054 = vcmask 1047559
        %v1055 = vsel %vm1054, %v1041, %v1053
        %vm1057 = vcmask 130048
        %v1058 = vsel %vm1057, %v1055, -inf
        %1059 = vmax.xlane.f32.xlu0 %v1058
        %v1060 = vpop.xlane.xlu0 %1059
        %v1062 = vperm.slane %v1060, 0
        %v1063 = vperm.slane %v1060, 1
        %v1064 = vperm.slane %v1060, 2
        %v1065 = vperm.slane %v1060, 3
        %v1066 = vperm.slane %v1060, 4
        %v1067 = vperm.slane %v1060, 5
        %v1068 = vperm.slane %v1060, 6
        %v1069 = vperm.slane %v1060, 7
        %v1078 = vsub.f32 %v982, %v1062
        %v1079 = vsub.f32 %v983, %v1062
        %v1080 = vsub.f32 %v984, %v1063
        %v1081 = vsub.f32 %v985, %v1063
        %v1082 = vsub.f32 %v986, %v1064
        %v1083 = vsub.f32 %v987, %v1064
        %v1084 = vsub.f32 %v988, %v1065
        %v1085 = vsub.f32 %v989, %v1065
        %v1086 = vsub.f32 %v990, %v1066
        %v1087 = vsub.f32 %v991, %v1066
        %v1088 = vsub.f32 %v992, %v1067
        %v1089 = vsub.f32 %v993, %v1067
        %v1090 = vsub.f32 %v994, %v1068
        %v1091 = vsub.f32 %v995, %v1068
        %v1092 = vsub.f32 %v996, %v1069
        %v1093 = vsub.f32 %v997, %v1069
        %v1094 = vmul.f32 %v1078, 1.442695
        %v1095 = vpow.pop %v1094
        %v1096 = vmul.f32 %v1079, 1.442695
        %v1097 = vpow.pop %v1096
        %v1098 = vmul.f32 %v1080, 1.442695
        %v1099 = vpow.pop %v1098
        %v1100 = vmul.f32 %v1081, 1.442695
        %v1101 = vpow.pop %v1100
        %v1102 = vmul.f32 %v1082, 1.442695
        %v1103 = vpow.pop %v1102
        %v1104 = vmul.f32 %v1083, 1.442695
        %v1105 = vpow.pop %v1104
        %v1106 = vmul.f32 %v1084, 1.442695
        %v1107 = vpow.pop %v1106
        %v1108 = vmul.f32 %v1085, 1.442695
        %v1109 = vpow.pop %v1108
        %v1110 = vmul.f32 %v1086, 1.442695
        %v1111 = vpow.pop %v1110
        %v1112 = vmul.f32 %v1087, 1.442695
        %v1113 = vpow.pop %v1112
        %v1114 = vmul.f32 %v1088, 1.442695
        %v1115 = vpow.pop %v1114
        %v1116 = vmul.f32 %v1089, 1.442695
        %v1117 = vpow.pop %v1116
        %v1118 = vmul.f32 %v1090, 1.442695
        %v1119 = vpow.pop %v1118
        %v1120 = vmul.f32 %v1091, 1.442695
        %v1121 = vpow.pop %v1120
        %v1122 = vmul.f32 %v1092, 1.442695
        %v1123 = vpow.pop %v1122
        %v1124 = vmul.f32 %v1093, 1.442695
        %v1125 = vpow.pop %v1124
        %1142 = vset.pattern.permute.xlu0 0
        %1143 = vperm.xlu0 %1142, %v1095
        %v1144 = vpop.permute.xlu0 %1143
        %1145 = vset.pattern.permute.xlu0 0
        %1146 = vperm.xlu0 %1145, %v1097
        %v1147 = vpop.permute.xlu0 %1146
        %1148 = vset.pattern.permute.xlu0 0
        %1149 = vperm.xlu0 %1148, %v1099
        %v1150 = vpop.permute.xlu0 %1149
        %1151 = vset.pattern.permute.xlu0 0
        %1152 = vperm.xlu0 %1151, %v1101
        %v1153 = vpop.permute.xlu0 %1152
        %1154 = vset.pattern.permute.xlu0 0
        %1155 = vperm.xlu0 %1154, %v1103
        %v1156 = vpop.permute.xlu0 %1155
        %1157 = vset.pattern.permute.xlu0 0
        %1158 = vperm.xlu0 %1157, %v1105
        %v1159 = vpop.permute.xlu0 %1158
        %1160 = vset.pattern.permute.xlu0 0
        %1161 = vperm.xlu0 %1160, %v1107
        %v1162 = vpop.permute.xlu0 %1161
        %1163 = vset.pattern.permute.xlu0 0
        %1164 = vperm.xlu0 %1163, %v1109
        %v1165 = vpop.permute.xlu0 %1164
        %1166 = vset.pattern.permute.xlu0 0
        %1167 = vperm.xlu0 %1166, %v1111
        %v1168 = vpop.permute.xlu0 %1167
        %1169 = vset.pattern.permute.xlu0 0
        %1170 = vperm.xlu0 %1169, %v1113
        %v1171 = vpop.permute.xlu0 %1170
        %1172 = vset.pattern.permute.xlu0 0
        %1173 = vperm.xlu0 %1172, %v1115
        %v1174 = vpop.permute.xlu0 %1173
        %1175 = vset.pattern.permute.xlu0 0
        %1176 = vperm.xlu0 %1175, %v1117
        %v1177 = vpop.permute.xlu0 %1176
        %1178 = vset.pattern.permute.xlu0 0
        %1179 = vperm.xlu0 %1178, %v1119
        %v1180 = vpop.permute.xlu0 %1179
        %1181 = vset.pattern.permute.xlu0 0
        %1182 = vperm.xlu0 %1181, %v1121
        %v1183 = vpop.permute.xlu0 %1182
        %1184 = vset.pattern.permute.xlu0 0
        %1185 = vperm.xlu0 %1184, %v1123
        %v1186 = vpop.permute.xlu0 %1185
        %1187 = vset.pattern.permute.xlu0 0
        %1188 = vperm.xlu0 %1187, %v1125
        %v1189 = vpop.permute.xlu0 %1188
        %v1190 = vperm.slane %v1144, %v1015
        %v1191 = vperm.slane %v1147, %v1017
        %v1192 = vsel %vm1019, %v1191, %v1190
        %v1193 = vperm.slane %v1150, %v1015
        %v1194 = vperm.slane %v1153, %v1017
        %v1195 = vsel %vm1019, %v1194, %v1193
        %v1196 = vperm.slane %v1156, %v1015
        %v1197 = vperm.slane %v1159, %v1017
        %v1198 = vsel %vm1019, %v1197, %v1196
        %v1199 = vperm.slane %v1162, %v1015
        %v1200 = vperm.slane %v1165, %v1017
        %v1201 = vsel %vm1019, %v1200, %v1199
        %v1202 = vperm.slane %v1168, %v1015
        %v1203 = vperm.slane %v1171, %v1017
        %v1204 = vsel %vm1019, %v1203, %v1202
        %v1205 = vperm.slane %v1174, %v1015
        %v1206 = vperm.slane %v1177, %v1017
        %v1207 = vsel %vm1019, %v1206, %v1205
        %v1208 = vperm.slane %v1180, %v1015
        %v1209 = vperm.slane %v1183, %v1017
        %v1210 = vsel %vm1019, %v1209, %v1208
        %v1211 = vperm.slane %v1186, %v1015
        %v1212 = vperm.slane %v1189, %v1017
        %v1213 = vsel %vm1019, %v1212, %v1211
        %v1214 = vsel %vm1042, %v1195, %v1192
        %v1215 = vsel %vm1044, %v1198, %v1214
        %v1216 = vsel %vm1046, %v1201, %v1215
        %v1217 = vsel %vm1048, %v1204, %v1216
        %v1218 = vsel %vm1050, %v1207, %v1217
        %v1219 = vsel %vm1052, %v1210, %v1218
        %v1220 = vsel %vm1054, %v1213, %v1219
        %v1222 = vsel %vm1057, %v1220, 0.0
        %1223 = vadd.xlane.f32.xlu0 %v1222
        %v1224 = vpop.xlane.xlu0 %1223
        %v1225 = vrcp.pop %v1224
        %v1227 = vperm.slane %v1225, 0
        %v1228 = vperm.slane %v1225, 1
        %v1229 = vperm.slane %v1225, 2
        %v1230 = vperm.slane %v1225, 3
        %v1231 = vperm.slane %v1225, 4
        %v1232 = vperm.slane %v1225, 5
        %v1233 = vperm.slane %v1225, 6
        %v1234 = vperm.slane %v1225, 7
        %v1243 = vmul.f32 %v1095, %v1227
        %v1244 = vmul.f32 %v1097, %v1227
        %v1245 = vmul.f32 %v1099, %v1228
        %v1246 = vmul.f32 %v1101, %v1228
        %v1247 = vmul.f32 %v1103, %v1229
        %v1248 = vmul.f32 %v1105, %v1229
        %v1249 = vmul.f32 %v1107, %v1230
        %v1250 = vmul.f32 %v1109, %v1230
        %v1251 = vmul.f32 %v1111, %v1231
        %v1252 = vmul.f32 %v1113, %v1231
        %v1253 = vmul.f32 %v1115, %v1232
        %v1254 = vmul.f32 %v1117, %v1232
        %v1255 = vmul.f32 %v1119, %v1233
        %v1256 = vmul.f32 %v1121, %v1233
        %v1257 = vmul.f32 %v1123, %v1234
        %v1258 = vmul.f32 %v1125, %v1234
        %1261 = vset.pattern.permute.xlu0 0
        %1262 = vperm.xlu0 %1261, %v1243
        %v1263 = vpop.permute.xlu0 %1262
        %1264 = vset.pattern.permute.xlu0 0
        %1265 = vperm.xlu0 %1264, %v1244
        %v1266 = vpop.permute.xlu0 %1265
        %v1267 = vperm.slane %v1263, %v1015
        %v1268 = vperm.slane %v1266, %v1017
        %v1269 = vsel %vm1019, %v1268, %v1267
        %v1270 = vsel %vm1057, %v1269, 0
        %1272 = vmatpush.msra.mxu0 0.0
        %1273 = vmatpush.msra.mxu0 0.0
        %1274 = vmatpush.msra.mxu0 0.0
        %1275 = vmatpush.msra.mxu0 0.0
        %1276 = vmatpush.msra.mxu0 0.0
        %1277 = vmatpush.msra.mxu0 0.0
        %1278 = vmatpush.msra.mxu0 0.0
        %1279 = vmatpush.msra.mxu0 0.0
        %1280 = vmatpush.msra.mxu0 0.0
        %1281 = vmatpush.msra.mxu0 0.0
        %1282 = vmatpush.msra.mxu0 0.0
        %1283 = vmatpush.msra.mxu0 0.0
        %1284 = vmatpush.msra.mxu0 0.0
        %1285 = vmatpush.msra.mxu0 0.0
        %1286 = vmatpush.msra.mxu0 %v667
        %1287 = vmatpush.msra.mxu0 %v666
        %1288 = vmatmul.f32.gmra.mxu0 %v1270
        %v1289 = vpop.f32.mrf.mxu0
        %v1290 = vadd.f32 0.0, %v1289
        %1291 = vdwg.mxu0
        %1294 = vset.pattern.permute.xlu0 0
        %1295 = vperm.xlu0 %1294, %v1245
        %v1296 = vpop.permute.xlu0 %1295
        %1297 = vset.pattern.permute.xlu0 0
        %1298 = vperm.xlu0 %1297, %v1246
        %v1299 = vpop.permute.xlu0 %1298
        %v1300 = vperm.slane %v1296, %v1015
        %v1301 = vperm.slane %v1299, %v1017
        %v1302 = vsel %vm1019, %v1301, %v1300
        %v1303 = vsel %vm1057, %v1302, 0
        %1305 = vmatpush.msra.mxu0 0.0
        %1306 = vmatpush.msra.mxu0 0.0
        %1307 = vmatpush.msra.mxu0 0.0
        %1308 = vmatpush.msra.mxu0 0.0
        %1309 = vmatpush.msra.mxu0 0.0
        %1310 = vmatpush.msra.mxu0 0.0
        %1311 = vmatpush.msra.mxu0 0.0
        %1312 = vmatpush.msra.mxu0 0.0
        %1313 = vmatpush.msra.mxu0 0.0
        %1314 = vmatpush.msra.mxu0 0.0
        %1315 = vmatpush.msra.mxu0 0.0
        %1316 = vmatpush.msra.mxu0 0.0
        %1317 = vmatpush.msra.mxu0 0.0
        %1318 = vmatpush.msra.mxu0 0.0
        %1319 = vmatpush.msra.mxu0 %v669
        %1320 = vmatpush.msra.mxu0 %v668
        %1321 = vmatmul.f32.gmra.mxu0 %v1303
        %v1322 = vpop.f32.mrf.mxu0
        %v1323 = vadd.f32 0.0, %v1322
        %1324 = vdwg.mxu0
        %1327 = vset.pattern.permute.xlu0 0
        %1328 = vperm.xlu0 %1327, %v1247
        %v1329 = vpop.permute.xlu0 %1328
        %1330 = vset.pattern.permute.xlu0 0
        %1331 = vperm.xlu0 %1330, %v1248
        %v1332 = vpop.permute.xlu0 %1331
        %v1333 = vperm.slane %v1329, %v1015
        %v1334 = vperm.slane %v1332, %v1017
        %v1335 = vsel %vm1019, %v1334, %v1333
        %v1336 = vsel %vm1057, %v1335, 0
        %1338 = vmatpush.msra.mxu0 0.0
        %1339 = vmatpush.msra.mxu0 0.0
        %1340 = vmatpush.msra.mxu0 0.0
        %1341 = vmatpush.msra.mxu0 0.0
        %1342 = vmatpush.msra.mxu0 0.0
        %1343 = vmatpush.msra.mxu0 0.0
        %1344 = vmatpush.msra.mxu0 0.0
        %1345 = vmatpush.msra.mxu0 0.0
        %1346 = vmatpush.msra.mxu0 0.0
        %1347 = vmatpush.msra.mxu0 0.0
        %1348 = vmatpush.msra.mxu0 0.0
        %1349 = vmatpush.msra.mxu0 0.0
        %1350 = vmatpush.msra.mxu0 0.0
        %1351 = vmatpush.msra.mxu0 0.0
        %1352 = vmatpush.msra.mxu0 %v671
        %1353 = vmatpush.msra.mxu0 %v670
        %1354 = vmatmul.f32.gmra.mxu0 %v1336
        %v1355 = vpop.f32.mrf.mxu0
        %v1356 = vadd.f32 0.0, %v1355
        %1357 = vdwg.mxu0
        %1360 = vset.pattern.permute.xlu0 0
        %1361 = vperm.xlu0 %1360, %v1249
        %v1362 = vpop.permute.xlu0 %1361
        %1363 = vset.pattern.permute.xlu0 0
        %1364 = vperm.xlu0 %1363, %v1250
        %v1365 = vpop.permute.xlu0 %1364
        %v1366 = vperm.slane %v1362, %v1015
        %v1367 = vperm.slane %v1365, %v1017
        %v1368 = vsel %vm1019, %v1367, %v1366
        %v1369 = vsel %vm1057, %v1368, 0
        %1371 = vmatpush.msra.mxu0 0.0
        %1372 = vmatpush.msra.mxu0 0.0
        %1373 = vmatpush.msra.mxu0 0.0
        %1374 = vmatpush.msra.mxu0 0.0
        %1375 = vmatpush.msra.mxu0 0.0
        %1376 = vmatpush.msra.mxu0 0.0
        %1377 = vmatpush.msra.mxu0 0.0
        %1378 = vmatpush.msra.mxu0 0.0
        %1379 = vmatpush.msra.mxu0 0.0
        %1380 = vmatpush.msra.mxu0 0.0
        %1381 = vmatpush.msra.mxu0 0.0
        %1382 = vmatpush.msra.mxu0 0.0
        %1383 = vmatpush.msra.mxu0 0.0
        %1384 = vmatpush.msra.mxu0 0.0
        %1385 = vmatpush.msra.mxu0 %v673
        %1386 = vmatpush.msra.mxu0 %v672
        %1387 = vmatmul.f32.gmra.mxu0 %v1369
        %v1388 = vpop.f32.mrf.mxu0
        %v1389 = vadd.f32 0.0, %v1388
        %1390 = vdwg.mxu0
        %1393 = vset.pattern.permute.xlu0 0
        %1394 = vperm.xlu0 %1393, %v1251
        %v1395 = vpop.permute.xlu0 %1394
        %1396 = vset.pattern.permute.xlu0 0
        %1397 = vperm.xlu0 %1396, %v1252
        %v1398 = vpop.permute.xlu0 %1397
        %v1399 = vperm.slane %v1395, %v1015
        %v1400 = vperm.slane %v1398, %v1017
        %v1401 = vsel %vm1019, %v1400, %v1399
        %v1402 = vsel %vm1057, %v1401, 0
        %1404 = vmatpush.msra.mxu0 0.0
        %1405 = vmatpush.msra.mxu0 0.0
        %1406 = vmatpush.msra.mxu0 0.0
        %1407 = vmatpush.msra.mxu0 0.0
        %1408 = vmatpush.msra.mxu0 0.0
        %1409 = vmatpush.msra.mxu0 0.0
        %1410 = vmatpush.msra.mxu0 0.0
        %1411 = vmatpush.msra.mxu0 0.0
        %1412 = vmatpush.msra.mxu0 0.0
        %1413 = vmatpush.msra.mxu0 0.0
        %1414 = vmatpush.msra.mxu0 0.0
        %1415 = vmatpush.msra.mxu0 0.0
        %1416 = vmatpush.msra.mxu0 0.0
        %1417 = vmatpush.msra.mxu0 0.0
        %1418 = vmatpush.msra.mxu0 %v675
        %1419 = vmatpush.msra.mxu0 %v674
        %1420 = vmatmul.f32.gmra.mxu0 %v1402
        %v1421 = vpop.f32.mrf.mxu0
        %v1422 = vadd.f32 0.0, %v1421
        %1423 = vdwg.mxu0
        %1426 = vset.pattern.permute.xlu0 0
        %1427 = vperm.xlu0 %1426, %v1253
        %v1428 = vpop.permute.xlu0 %1427
        %1429 = vset.pattern.permute.xlu0 0
        %1430 = vperm.xlu0 %1429, %v1254
        %v1431 = vpop.permute.xlu0 %1430
        %v1432 = vperm.slane %v1428, %v1015
        %v1433 = vperm.slane %v1431, %v1017
        %v1434 = vsel %vm1019, %v1433, %v1432
        %v1435 = vsel %vm1057, %v1434, 0
        %1437 = vmatpush.msra.mxu0 0.0
        %1438 = vmatpush.msra.mxu0 0.0
        %1439 = vmatpush.msra.mxu0 0.0
        %1440 = vmatpush.msra.mxu0 0.0
        %1441 = vmatpush.msra.mxu0 0.0
        %1442 = vmatpush.msra.mxu0 0.0
        %1443 = vmatpush.msra.mxu0 0.0
        %1444 = vmatpush.msra.mxu0 0.0
        %1445 = vmatpush.msra.mxu0 0.0
        %1446 = vmatpush.msra.mxu0 0.0
        %1447 = vmatpush.msra.mxu0 0.0
        %1448 = vmatpush.msra.mxu0 0.0
        %1449 = vmatpush.msra.mxu0 0.0
        %1450 = vmatpush.msra.mxu0 0.0
        %1451 = vmatpush.msra.mxu0 %v677
        %1452 = vmatpush.msra.mxu0 %v676
        %1453 = vmatmul.f32.gmra.mxu0 %v1435
        %v1454 = vpop.f32.mrf.mxu0
        %v1455 = vadd.f32 0.0, %v1454
        %1456 = vdwg.mxu0
        %1459 = vset.pattern.permute.xlu0 0
        %1460 = vperm.xlu0 %1459, %v1255
        %v1461 = vpop.permute.xlu0 %1460
        %1462 = vset.pattern.permute.xlu0 0
        %1463 = vperm.xlu0 %1462, %v1256
        %v1464 = vpop.permute.xlu0 %1463
        %v1465 = vperm.slane %v1461, %v1015
        %v1466 = vperm.slane %v1464, %v1017
        %v1467 = vsel %vm1019, %v1466, %v1465
        %v1468 = vsel %vm1057, %v1467, 0
        %1470 = vmatpush.msra.mxu0 0.0
        %1471 = vmatpush.msra.mxu0 0.0
        %1472 = vmatpush.msra.mxu0 0.0
        %1473 = vmatpush.msra.mxu0 0.0
        %1474 = vmatpush.msra.mxu0 0.0
        %1475 = vmatpush.msra.mxu0 0.0
        %1476 = vmatpush.msra.mxu0 0.0
        %1477 = vmatpush.msra.mxu0 0.0
        %1478 = vmatpush.msra.mxu0 0.0
        %1479 = vmatpush.msra.mxu0 0.0
        %1480 = vmatpush.msra.mxu0 0.0
        %1481 = vmatpush.msra.mxu0 0.0
        %1482 = vmatpush.msra.mxu0 0.0
        %1483 = vmatpush.msra.mxu0 0.0
        %1484 = vmatpush.msra.mxu0 %v679
        %1485 = vmatpush.msra.mxu0 %v678
        %1486 = vmatmul.f32.gmra.mxu0 %v1468
        %v1487 = vpop.f32.mrf.mxu0
        %v1488 = vadd.f32 0.0, %v1487
        %1489 = vdwg.mxu0
        %1492 = vset.pattern.permute.xlu0 0
        %1493 = vperm.xlu0 %1492, %v1257
        %v1494 = vpop.permute.xlu0 %1493
        %1495 = vset.pattern.permute.xlu0 0
        %1496 = vperm.xlu0 %1495, %v1258
        %v1497 = vpop.permute.xlu0 %1496
        %v1498 = vperm.slane %v1494, %v1015
        %v1499 = vperm.slane %v1497, %v1017
        %v1500 = vsel %vm1019, %v1499, %v1498
        %v1501 = vsel %vm1057, %v1500, 0
        %1503 = vmatpush.msra.mxu0 0.0
        %1504 = vmatpush.msra.mxu0 0.0
        %1505 = vmatpush.msra.mxu0 0.0
        %1506 = vmatpush.msra.mxu0 0.0
        %1507 = vmatpush.msra.mxu0 0.0
        %1508 = vmatpush.msra.mxu0 0.0
        %1509 = vmatpush.msra.mxu0 0.0
        %1510 = vmatpush.msra.mxu0 0.0
        %1511 = vmatpush.msra.mxu0 0.0
        %1512 = vmatpush.msra.mxu0 0.0
        %1513 = vmatpush.msra.mxu0 0.0
        %1514 = vmatpush.msra.mxu0 0.0
        %1515 = vmatpush.msra.mxu0 0.0
        %1516 = vmatpush.msra.mxu0 0.0
        %1517 = vmatpush.msra.mxu0 %v681
        %1518 = vmatpush.msra.mxu0 %v680
        %1519 = vmatmul.f32.gmra.mxu0 %v1501
        %v1520 = vpop.f32.mrf.mxu0
        %v1521 = vadd.f32 0.0, %v1520
        %1522 = vdwg.mxu0
        %v1523 = vld [vmem:[#allocation14] sm:$0xff]
        %v1524 = vld [vmem:[#allocation14 + $0x8] sm:$0xff]
        %v1525 = vld [vmem:[#allocation15] sm:$0xff]
        %v1526 = vld [vmem:[#allocation15 + $0x8] sm:$0xff]
        %v1527 = vld [vmem:[#allocation15 + $0x10] sm:$0xff]
        %v1528 = vld [vmem:[#allocation15 + $0x18] sm:$0xff]
        %v1537 = vrot.slane %v1323, 7
        %v1538 = vsel %vm1042, %v1537, %v1290
        %v1539 = vrot.slane %v1356, 6
        %v1540 = vsel %vm1044, %v1539, %v1538
        %v1541 = vrot.slane %v1389, 5
        %v1542 = vsel %vm1046, %v1541, %v1540
        %v1543 = vrot.slane %v1422, 4
        %v1544 = vsel %vm1048, %v1543, %v1542
        %v1545 = vrot.slane %v1455, 3
        %v1546 = vsel %vm1050, %v1545, %v1544
        %v1547 = vrot.slane %v1488, 2
        %v1548 = vsel %vm1052, %v1547, %v1546
        %v1549 = vrot.slane %v1521, 1
        %v1550 = vsel %vm1054, %v1549, %v1548
        %v1551 = vsel %vm686, %v1550, 0
        %1553 = vmatpush.msra.mxu0 0.0
        %1554 = vmatpush.msra.mxu0 0.0
        %1555 = vmatpush.msra.mxu0 0.0
        %1556 = vmatpush.msra.mxu0 0.0
        %1557 = vmatpush.msra.mxu0 0.0
        %1558 = vmatpush.msra.mxu0 0.0
        %1559 = vmatpush.msra.mxu0 0.0
        %1560 = vmatpush.msra.mxu0 0.0
        %1561 = vmatpush.msra.mxu0 0.0
        %1562 = vmatpush.msra.mxu0 0.0
        %1563 = vmatpush.msra.mxu0 0.0
        %1564 = vmatpush.msra.mxu0 0.0
        %1565 = vmatpush.msra.mxu0 %v1528
        %1566 = vmatpush.msra.mxu0 %v1527
        %1567 = vmatpush.msra.mxu0 %v1526
        %1568 = vmatpush.msra.mxu0 %v1525
        %1569 = vmatmul.f32.gmra.mxu0 %v1551
        %v1570 = vpop.f32.mrf.mxu0
        %v1571 = vadd.f32 0.0, %v1570
        %1572 = vdwg.mxu0
        %v1574 = vsel %vm1057, %v664, 0
        %1576 = vmatpush.msra.mxu0 0.0
        %1577 = vmatpush.msra.mxu0 0.0
        %1578 = vmatpush.msra.mxu0 0.0
        %1579 = vmatpush.msra.mxu0 0.0
        %1580 = vmatpush.msra.mxu0 0.0
        %1581 = vmatpush.msra.mxu0 0.0
        %1582 = vmatpush.msra.mxu0 0.0
        %1583 = vmatpush.msra.mxu0 0.0
        %1584 = vmatpush.msra.mxu0 0.0
        %1585 = vmatpush.msra.mxu0 0.0
        %1586 = vmatpush.msra.mxu0 0.0
        %1587 = vmatpush.msra.mxu0 0.0
        %1588 = vmatpush.msra.mxu0 0.0
        %1589 = vmatpush.msra.mxu0 0.0
        %1590 = vmatpush.msra.mxu0 %v1524
        %1591 = vmatpush.msra.mxu0 %v1523
        %1592 = vmatmul.f32.gmra.mxu0 %v1574
        %v1593 = vpop.f32.mrf.mxu0
        %v1594 = vadd.f32 %v1571, %v1593
        %1595 = vdwg.mxu0
        %v1596 = vld [vmem:[%s12] sm:$0x1]
        %v1598 = vperm.slane %v1596, 0
        %v1600 = vadd.f32 %v1594, %v1598
        %v1601 = vld [vmem:[#allocation17] sm:$0xff]
        %v1602 = vld [vmem:[#allocation17 + $0x8] sm:$0xff]
        %v1603 = vld [vmem:[#allocation17 + $0x10] sm:$0xff]
        %v1604 = vld [vmem:[#allocation17 + $0x18] sm:$0xff]
        %v1605 = vld [vmem:[%s13] sm:$0x1]
        %v1607 = vperm.slane %v1605, 0
        %1609 = vmatpush.msra.mxu0 0.0
        %1610 = vmatpush.msra.mxu0 0.0
        %1611 = vmatpush.msra.mxu0 0.0
        %1612 = vmatpush.msra.mxu0 0.0
        %1613 = vmatpush.msra.mxu0 0.0
        %1614 = vmatpush.msra.mxu0 0.0
        %1615 = vmatpush.msra.mxu0 0.0
        %1616 = vmatpush.msra.mxu0 0.0
        %1617 = vmatpush.msra.mxu0 0.0
        %1618 = vmatpush.msra.mxu0 0.0
        %1619 = vmatpush.msra.mxu0 0.0
        %1620 = vmatpush.msra.mxu0 0.0
        %1621 = vmatpush.msra.mxu0 %v1604
        %1622 = vmatpush.msra.mxu0 %v1603
        %1623 = vmatpush.msra.mxu0 %v1602
        %1624 = vmatpush.msra.mxu0 %v1601
        %1625 = vmatmul.f32.gmra.mxu0 %v829
        %v1626 = vpop.f32.mrf.mxu0
        %v1627 = vadd.f32 %v1607, %v1626
        %1628 = vdwg.mxu0
        %v1629 = vadd.f32 %v1600, %v1627
        %v1630 = vxor.u32 %v1629, 2147483648
        %v1631 = vmul.f32 %v1630, 1.442695
        %v1632 = vpow.pop %v1631
        %v1633 = vadd.f32 %v1632, 1.0
        %v1634 = vrcp.pop %v1633
        %v1635 = vmul.f32 %v1633, %v1634
        %v1636 = vsub.f32 1.0, %v1635
        %v1637 = vmul.f32 %v1634, %v1636
        %v1638 = vadd.f32 %v1634, %v1637
        %vm1639 = vweird.f32 %v1633
        %vm1640 = vweird.f32 %v1634
        %vm1641 = vmor %vm1639, %vm1640
        %v1642 = vsel %vm1641, %v1634, %v1638
        %v1643 = vand.u32 2147483647, %v1633
        %vm1644 = vcmp.eq.f32.partialorder %v1643, 8.507059e+37
        %v1645 = vand.u32 %v1633, 2147483648
        %v1646 = vor.u32 1.1754944e-38, %v1645
        %v1647 = vsel %vm1644, %v1646, %v1642
        %v1648 = vmul.f32 1.0, %v1647
        %s1649 = scalar_lea.vmem [#allocation14], 16
        %v1650 = vld [vmem:[%s1649] sm:$0xff]
        %v1651 = vld [vmem:[%s1649 + $0x8] sm:$0xff]
        %s1652 = scalar_lea.vmem [#allocation15], 32
        %v1653 = vld [vmem:[%s1652] sm:$0xff]
        %v1654 = vld [vmem:[%s1652 + $0x8] sm:$0xff]
        %v1655 = vld [vmem:[%s1652 + $0x10] sm:$0xff]
        %v1656 = vld [vmem:[%s1652 + $0x18] sm:$0xff]
        %1657 = vmatpush.msra.mxu0 0.0
        %1658 = vmatpush.msra.mxu0 0.0
        %1659 = vmatpush.msra.mxu0 0.0
        %1660 = vmatpush.msra.mxu0 0.0
        %1661 = vmatpush.msra.mxu0 0.0
        %1662 = vmatpush.msra.mxu0 0.0
        %1663 = vmatpush.msra.mxu0 0.0
        %1664 = vmatpush.msra.mxu0 0.0
        %1665 = vmatpush.msra.mxu0 0.0
        %1666 = vmatpush.msra.mxu0 0.0
        %1667 = vmatpush.msra.mxu0 0.0
        %1668 = vmatpush.msra.mxu0 0.0
        %1669 = vmatpush.msra.mxu0 %v1656
        %1670 = vmatpush.msra.mxu0 %v1655
        %1671 = vmatpush.msra.mxu0 %v1654
        %1672 = vmatpush.msra.mxu0 %v1653
        %1673 = vmatmul.f32.gmra.mxu0 %v1551
        %v1674 = vpop.f32.mrf.mxu0
        %v1675 = vadd.f32 0.0, %v1674
        %1676 = vdwg.mxu0
        %1677 = vmatpush.msra.mxu0 0.0
        %1678 = vmatpush.msra.mxu0 0.0
        %1679 = vmatpush.msra.mxu0 0.0
        %1680 = vmatpush.msra.mxu0 0.0
        %1681 = vmatpush.msra.mxu0 0.0
        %1682 = vmatpush.msra.mxu0 0.0
        %1683 = vmatpush.msra.mxu0 0.0
        %1684 = vmatpush.msra.mxu0 0.0
        %1685 = vmatpush.msra.mxu0 0.0
        %1686 = vmatpush.msra.mxu0 0.0
        %1687 = vmatpush.msra.mxu0 0.0
        %1688 = vmatpush.msra.mxu0 0.0
        %1689 = vmatpush.msra.mxu0 0.0
        %1690 = vmatpush.msra.mxu0 0.0
        %1691 = vmatpush.msra.mxu0 %v1651
        %1692 = vmatpush.msra.mxu0 %v1650
        %1693 = vmatmul.f32.gmra.mxu0 %v1574
        %v1694 = vpop.f32.mrf.mxu0
        %v1695 = vadd.f32 %v1675, %v1694
        %1696 = vdwg.mxu0
        %s1697 = scalar_lea.vmem %s12, 1
        %v1698 = vld [vmem:[%s1697] sm:$0x1]
        %v1700 = vperm.slane %v1698, 0
        %v1702 = vadd.f32 %v1695, %v1700
        %s1703 = scalar_lea.vmem [#allocation17], 32
        %v1704 = vld [vmem:[%s1703] sm:$0xff]
        %v1705 = vld [vmem:[%s1703 + $0x8] sm:$0xff]
        %v1706 = vld [vmem:[%s1703 + $0x10] sm:$0xff]
        %v1707 = vld [vmem:[%s1703 + $0x18] sm:$0xff]
        %s1708 = scalar_lea.vmem %s13, 1
        %v1709 = vld [vmem:[%s1708] sm:$0x1]
        %v1711 = vperm.slane %v1709, 0
        %1713 = vmatpush.msra.mxu0 0.0
        %1714 = vmatpush.msra.mxu0 0.0
        %1715 = vmatpush.msra.mxu0 0.0
        %1716 = vmatpush.msra.mxu0 0.0
        %1717 = vmatpush.msra.mxu0 0.0
        %1718 = vmatpush.msra.mxu0 0.0
        %1719 = vmatpush.msra.mxu0 0.0
        %1720 = vmatpush.msra.mxu0 0.0
        %1721 = vmatpush.msra.mxu0 0.0
        %1722 = vmatpush.msra.mxu0 0.0
        %1723 = vmatpush.msra.mxu0 0.0
        %1724 = vmatpush.msra.mxu0 0.0
        %1725 = vmatpush.msra.mxu0 %v1707
        %1726 = vmatpush.msra.mxu0 %v1706
        %1727 = vmatpush.msra.mxu0 %v1705
        %1728 = vmatpush.msra.mxu0 %v1704
        %1729 = vmatmul.f32.gmra.mxu0 %v829
        %v1730 = vpop.f32.mrf.mxu0
        %v1731 = vadd.f32 %v1711, %v1730
        %1732 = vdwg.mxu0
        %v1733 = vadd.f32 %v1702, %v1731
        %v1734 = vxor.u32 %v1733, 2147483648
        %v1735 = vmul.f32 %v1734, 1.442695
        %v1736 = vpow.pop %v1735
        %v1737 = vadd.f32 %v1736, 1.0
        %v1738 = vrcp.pop %v1737
        %v1739 = vmul.f32 %v1737, %v1738
        %v1740 = vsub.f32 1.0, %v1739
        %v1741 = vmul.f32 %v1738, %v1740
        %v1742 = vadd.f32 %v1738, %v1741
        %vm1743 = vweird.f32 %v1737
        %vm1744 = vweird.f32 %v1738
        %vm1745 = vmor %vm1743, %vm1744
        %v1746 = vsel %vm1745, %v1738, %v1742
        %v1747 = vand.u32 2147483647, %v1737
        %vm1748 = vcmp.eq.f32.partialorder %v1747, 8.507059e+37
        %v1749 = vand.u32 %v1737, 2147483648
        %v1750 = vor.u32 1.1754944e-38, %v1749
        %v1751 = vsel %vm1748, %v1750, %v1746
        %v1752 = vmul.f32 1.0, %v1751
        %s1753 = scalar_lea.vmem [#allocation14], 32
        %v1754 = vld [vmem:[%s1753] sm:$0xff]
        %v1755 = vld [vmem:[%s1753 + $0x8] sm:$0xff]
        %s1756 = scalar_lea.vmem [#allocation15], 64
        %v1757 = vld [vmem:[%s1756] sm:$0xff]
        %v1758 = vld [vmem:[%s1756 + $0x8] sm:$0xff]
        %v1759 = vld [vmem:[%s1756 + $0x10] sm:$0xff]
        %v1760 = vld [vmem:[%s1756 + $0x18] sm:$0xff]
        %1761 = vmatpush.msra.mxu0 0.0
        %1762 = vmatpush.msra.mxu0 0.0
        %1763 = vmatpush.msra.mxu0 0.0
        %1764 = vmatpush.msra.mxu0 0.0
        %1765 = vmatpush.msra.mxu0 0.0
        %1766 = vmatpush.msra.mxu0 0.0
        %1767 = vmatpush.msra.mxu0 0.0
        %1768 = vmatpush.msra.mxu0 0.0
        %1769 = vmatpush.msra.mxu0 0.0
        %1770 = vmatpush.msra.mxu0 0.0
        %1771 = vmatpush.msra.mxu0 0.0
        %1772 = vmatpush.msra.mxu0 0.0
        %1773 = vmatpush.msra.mxu0 %v1760
        %1774 = vmatpush.msra.mxu0 %v1759
        %1775 = vmatpush.msra.mxu0 %v1758
        %1776 = vmatpush.msra.mxu0 %v1757
        %1777 = vmatmul.f32.gmra.mxu0 %v1551
        %v1778 = vpop.f32.mrf.mxu0
        %v1779 = vadd.f32 0.0, %v1778
        %1780 = vdwg.mxu0
        %1781 = vmatpush.msra.mxu0 0.0
        %1782 = vmatpush.msra.mxu0 0.0
        %1783 = vmatpush.msra.mxu0 0.0
        %1784 = vmatpush.msra.mxu0 0.0
        %1785 = vmatpush.msra.mxu0 0.0
        %1786 = vmatpush.msra.mxu0 0.0
        %1787 = vmatpush.msra.mxu0 0.0
        %1788 = vmatpush.msra.mxu0 0.0
        %1789 = vmatpush.msra.mxu0 0.0
        %1790 = vmatpush.msra.mxu0 0.0
        %1791 = vmatpush.msra.mxu0 0.0
        %1792 = vmatpush.msra.mxu0 0.0
        %1793 = vmatpush.msra.mxu0 0.0
        %1794 = vmatpush.msra.mxu0 0.0
        %1795 = vmatpush.msra.mxu0 %v1755
        %1796 = vmatpush.msra.mxu0 %v1754
        %1797 = vmatmul.f32.gmra.mxu0 %v1574
        %v1798 = vpop.f32.mrf.mxu0
        %v1799 = vadd.f32 %v1779, %v1798
        %1800 = vdwg.mxu0
        %s1801 = scalar_lea.vmem %s12, 2
        %v1802 = vld [vmem:[%s1801] sm:$0x1]
        %v1804 = vperm.slane %v1802, 0
        %v1806 = vadd.f32 %v1799, %v1804
        %s1807 = scalar_lea.vmem [#allocation17], 64
        %v1808 = vld [vmem:[%s1807] sm:$0xff]
        %v1809 = vld [vmem:[%s1807 + $0x8] sm:$0xff]
        %v1810 = vld [vmem:[%s1807 + $0x10] sm:$0xff]
        %v1811 = vld [vmem:[%s1807 + $0x18] sm:$0xff]
        %s1812 = scalar_lea.vmem %s13, 2
        %v1813 = vld [vmem:[%s1812] sm:$0x1]
        %v1815 = vperm.slane %v1813, 0
        %1817 = vmatpush.msra.mxu0 0.0
        %1818 = vmatpush.msra.mxu0 0.0
        %1819 = vmatpush.msra.mxu0 0.0
        %1820 = vmatpush.msra.mxu0 0.0
        %1821 = vmatpush.msra.mxu0 0.0
        %1822 = vmatpush.msra.mxu0 0.0
        %1823 = vmatpush.msra.mxu0 0.0
        %1824 = vmatpush.msra.mxu0 0.0
        %1825 = vmatpush.msra.mxu0 0.0
        %1826 = vmatpush.msra.mxu0 0.0
        %1827 = vmatpush.msra.mxu0 0.0
        %1828 = vmatpush.msra.mxu0 0.0
        %1829 = vmatpush.msra.mxu0 %v1811
        %1830 = vmatpush.msra.mxu0 %v1810
        %1831 = vmatpush.msra.mxu0 %v1809
        %1832 = vmatpush.msra.mxu0 %v1808
        %1833 = vmatmul.f32.gmra.mxu0 %v829
        %v1834 = vpop.f32.mrf.mxu0
        %v1835 = vadd.f32 %v1815, %v1834
        %1836 = vdwg.mxu0
        %v1837 = vmul.f32 %v1648, %v1835
        %v1838 = vadd.f32 %v1806, %v1837
        %v1839 = vtanh.pop %v1838
        %v1840 = vsub.f32 1.0, %v1752
        %v1841 = vmul.f32 %v1840, %v1839
        %v1842 = vmul.f32 %v1752, %v665
        %v1843 = vadd.f32 %v1841, %v1842
        %1844 = vst.msk [vmem:[%s662] sm:$0xff] %vm686, %v1843
        %s1845 = sand.u32 %s356, 1
        %s1846 = scalar_lea.sflag [#allocation5], %s1845
        %s1847 = sand.u32 %s356, 1
        %s1848 = smul.addr %s1847, 8
        %s1849 = scalar_lea.vmem [#allocation18], %s1848
        // Predicated region
        $region113: #{tpu_custom_call.1} parent=75 // pred_check
          %p1850 = pneg %p366
        $region114: #{tpu_custom_call.1} parent=75 // pred_check_branch
          %1852 = sbr.rel (%p1850) target = $region116
        $region115: #{tpu_custom_call.1} parent=75 // pred_region
          %1854 = vsyncadd %s1846, 0
          %s1855 = smul.addr %s39, 8
          %s1856 = scalar_lea.hbm %s14, %s1855
          %s1858 = sshll.u32 %s1849, 4
          %s1859 = int_to_ptr.vmem [resolvable:$true] %s1858
          %s1860 = sshll.u32 %s1856, 4
          %s1861 = int_to_ptr.hbm [resolvable:$true] %s1860
          %1863 = dma.vmem_to_hbm [thread:$0]  %s1859, 128, %s1861, %s1846
        $region116: #{tpu_custom_call.1} parent=75 // pred_fallthru
          _
      $region76: #{tpu_custom_call.1} parent=5 // pred_fallthru
        _
      %p1864 = scmp.le.s32.totalorder 2, %s34
      // Predicated region
      $region117: #{tpu_custom_call.1} parent=5 // pred_check
        %p1865 = pneg %p1864
      $region118: #{tpu_custom_call.1} parent=5 // pred_check_branch
        %1867 = sbr.rel (%p1865) target = $region120
      $region119: #{tpu_custom_call.1} parent=5 // pred_region
        %s1868 = ssub.s32 %s34, 2
        // Predicated region
        $region121: #{tpu_custom_call.1} parent=119 // pred_check
          %p1869 = pneg %p372
        $region122: #{tpu_custom_call.1} parent=119 // pred_check_branch
          %1871 = sbr.rel (%p1869) target = $region124
        $region123: #{tpu_custom_call.1} parent=119 // pred_region
          %s1872 = sand.u32 %s357, 1
          %s1873 = scalar_lea.sflag [#allocation5], %s1872
          %s1874 = sand.u32 %s357, 1
          %s1875 = smul.addr %s1874, 8
          %s1876 = scalar_lea.vmem [#allocation18], %s1875
          %1878 = dma.done %s1873, 128
        $region124: #{tpu_custom_call.1} parent=119 // pred_fallthru
          _
      $region120: #{tpu_custom_call.1} parent=5 // pred_fallthru
        _
    $region6: #{tpu_custom_call.1} parent=1 // loop_footer
      %s38 = sadd.s32 1, %s34
    $region7: #{tpu_custom_call.1} parent=1 // loop_footer_branch
      %33 = sbr.rel target = $region3
    $region8: #{tpu_custom_call.1} parent=1 // loop_exit
      _
    %1879 = vsyncpa [#allocation4], 1
    %s1880 = scalar_lea.sflag [#allocation4], 1
    %1881 = vsyncpa %s1880, 1
    %1882 = vsyncpa [#allocation7], 1
    %s1883 = scalar_lea.sflag [#allocation7], 1
    %1884 = vsyncpa %s1883, 1
    %1885 = vsyncpa [#allocation10], 1
    %1886 = vsyncpa [#allocation13], 1
    %1887 = vsyncpa [#allocation16], 1
    %1888 = vsyncpa [#allocation5], 1
    %s1889 = scalar_lea.sflag [#allocation5], 1
    %1890 = vsyncpa %s1889, 1

</llo_original>
